<compile_context>
chip_gen: v7x
topology: tpu7x:2x2x1
jax: 0.10.0
libtpu: 0.0.40
codegen_flags: <defaults>
</compile_context>

<pallas_src>
import functools

import jax
import jax.numpy as jnp
from jax import lax
from jax.experimental import pallas as pl
from jax.experimental.pallas import tpu as pltpu


# ------------------------------------------------------------------ helpers
def _round_up(v, m):
    return (v + m - 1) // m * m


def _pad2d(x, rows, cols):
    r, c = x.shape
    return jnp.pad(x, ((0, rows - r), (0, cols - c)))


def _prelu(v, alpha_row):
    # alpha_row is a (1, d) lane-broadcast copy of the single PReLU slope.
    return jnp.where(v >= 0.0, v, alpha_row * v)


def _sage_epilogue(acc, inv_deg, h_row, wl, wr, b, alpha_row):
    """mean scale + Wl/Wr projections + bias + L2 normalize + PReLU (one row tile)."""
    # acc (f32) holds sum_j counts[i,j] * h[j]; scale by 1/deg in f32 (exact),
    # then round once to bf16 for the MXU projection.
    agg = (acc * inv_deg).astype(jnp.bfloat16)
    out = (jnp.dot(agg, wl, preferred_element_type=jnp.float32)
           + jnp.dot(h_row, wr, preferred_element_type=jnp.float32)
           + b)
    # F.normalize(p=2, dim=-1, eps=1e-12): v / max(||v||, eps)
    #   == v * rsqrt(max(||v||^2, eps^2))   (rsqrt lowers to the EUP slot)
    ss = jnp.sum(out * out, axis=-1, keepdims=True)
    out = out * lax.rsqrt(jnp.maximum(ss, 1e-24))
    return _prelu(out, alpha_row)


# ------------------------------------------------------------------ kernels
def _sage1_kernel(a_ref, xk_ref, xrow_ref, dinv_ref,
                  wl_ref, wr_ref, b_ref, wskip_ref, bskip_ref, alpha_ref,
                  h1_ref, skip_ref, acc_ref):
    """Layer 1: SAGE(x) with fused H1skip = x @ Wskip + bskip second output."""
    k = pl.program_id(1)

    @pl.when(k == 0)
    def _init():
        acc_ref[...] = jnp.zeros_like(acc_ref)

    acc_ref[...] += jnp.dot(a_ref[...], xk_ref[...],
                            preferred_element_type=jnp.float32)

    @pl.when(k == pl.num_programs(1) - 1)
    def _finalize():
        x_row = xrow_ref[...]
        h1_ref[...] = _sage_epilogue(acc_ref[...], dinv_ref[...], x_row,
                                     wl_ref[...], wr_ref[...], b_ref[...],
                                     alpha_ref[...]).astype(h1_ref.dtype)
        skip = (jnp.dot(x_row, wskip_ref[...], preferred_element_type=jnp.float32)
                + bskip_ref[...])
        skip_ref[...] = skip.astype(skip_ref.dtype)


def _sage_kernel(a_ref, hk_ref, hrow_ref, dinv_ref,
                 wl_ref, wr_ref, b_ref, alpha_ref,
                 out_ref, acc_ref, *, extra_prelu):
    """Layers 2/3: SAGE(h); extra_prelu adds the Encoder's final prelu (layer 3)."""
    k = pl.program_id(1)

    @pl.when(k == 0)
    def _init():
        acc_ref[...] = jnp.zeros_like(acc_ref)

    acc_ref[...] += jnp.dot(a_ref[...], hk_ref[...],
                            preferred_element_type=jnp.float32)

    @pl.when(k == pl.num_programs(1) - 1)
    def _finalize():
        out = _sage_epilogue(acc_ref[...], dinv_ref[...], hrow_ref[...],
                             wl_ref[...], wr_ref[...], b_ref[...],
                             alpha_ref[...])
        if extra_prelu:
            out = _prelu(out, alpha_ref[...])
        out_ref[...] = out.astype(out_ref.dtype)


# ------------------------------------------------------------- pallas calls
def _vmem_limit_bytes(tm, tk, d_in, d_out, n_weights, n_outputs):
    """Honest, N-independent VMEM budget for the tile plan (+ headroom)."""
    a_b    = 2 * tm * tk * 2                 # streamed A tile, double-buffered bf16
    feat_b = 2 * (tk + tm) * d_in * 2        # k-indexed + i-indexed feature blocks
    dinv_b = 2 * tm * 128 * 4                # (tm,1) f32 block, lane-padded
    w_b    = 2 * n_weights * d_in * d_out * 2 + 4 * 8 * 128 * 4 * 2   # weights + small row vecs
    out_b  = 2 * n_outputs * tm * d_out * 2  # bf16 outputs, double-buffered
    acc_b  = tm * d_in * 4                   # f32 accumulator scratch
    total = a_b + feat_b + dinv_b + w_b + out_b + acc_b
    # Never clamp below the computed requirement; 8 MiB headroom for epilogue
    # temporaries.  With the default tile caps this stays well under v7x's
    # 64 MiB physical VMEM (and far under v5e/v6e's 128 MiB).
    return max(total + (8 << 20), 32 << 20)


def _compiler_params(tm, tk, d_in, d_out, n_weights, n_outputs):
    return pltpu.CompilerParams(
        dimension_semantics=("parallel", "arbitrary"),
        vmem_limit_bytes=_vmem_limit_bytes(tm, tk, d_in, d_out,
                                           n_weights, n_outputs),
    )


def _bcast_spec(shape):
    # Constant-index block (weights / bias / prelu slope).
    # TODO(synk): try pipeline_mode=pl.Buffered(1) here to drop the unused
    # second buffer once verified on the target runtime.
    return pl.BlockSpec(shape, lambda i, k: (0, 0))


def _sage_layer1(a, x, dinv, wl, wr, b, wskip, bskip, alpha_row, *, tm, tk):
    n_pad = a.shape[0]
    d_in = x.shape[1]
    d_out = wl.shape[1]
    grid = (n_pad // tm, n_pad // tk)
    return pl.pallas_call(
        _sage1_kernel,
        out_shape=(jax.ShapeDtypeStruct((n_pad, d_out), jnp.bfloat16),
                   jax.ShapeDtypeStruct((n_pad, d_out), jnp.bfloat16)),
        grid_spec=pltpu.PrefetchScalarGridSpec(
            num_scalar_prefetch=0,
            grid=grid,
            in_specs=[
                pl.BlockSpec((tm, tk), lambda i, k: (i, k)),     # A counts, streamed
                pl.BlockSpec((tk, d_in), lambda i, k: (k, 0)),   # x_k (aggregation operand)
                pl.BlockSpec((tm, d_in), lambda i, k: (i, 0)),   # x_row (root / skip operand)
                pl.BlockSpec((tm, 1), lambda i, k: (i, 0)),      # 1/deg (f32)
                _bcast_spec((d_in, d_out)),                      # W1l
                _bcast_spec((d_in, d_out)),                      # W1r
                _bcast_spec((1, d_out)),                         # b1
                _bcast_spec((d_in, d_out)),                      # Wskip
                _bcast_spec((1, d_out)),                         # bskip
                _bcast_spec((1, d_out)),                         # PReLU slope (lane-broadcast)
            ],
            out_specs=[pl.BlockSpec((tm, d_out), lambda i, k: (i, 0)),
                       pl.BlockSpec((tm, d_out), lambda i, k: (i, 0))],
            scratch_shapes=[pltpu.VMEM((tm, d_in), jnp.float32)],
        ),
        compiler_params=_compiler_params(tm, tk, d_in, d_out, 3, 2),
    )(a, x, x, dinv, wl, wr, b, wskip, bskip, alpha_row)


def _sage_layer(a, h, dinv, wl, wr, b, alpha_row, *, tm, tk, extra_prelu):
    n_pad = a.shape[0]
    d_in = h.shape[1]
    d_out = wl.shape[1]
    grid = (n_pad // tm, n_pad // tk)
    kernel = functools.partial(_sage_kernel, extra_prelu=extra_prelu)
    return pl.pallas_call(
        kernel,
        out_shape=jax.ShapeDtypeStruct((n_pad, d_out), jnp.bfloat16),
        grid_spec=pltpu.PrefetchScalarGridSpec(
            num_scalar_prefetch=0,
            grid=grid,
            in_specs=[
                pl.BlockSpec((tm, tk), lambda i, k: (i, k)),     # A counts, streamed
                pl.BlockSpec((tk, d_in), lambda i, k: (k, 0)),   # h_k
                pl.BlockSpec((tm, d_in), lambda i, k: (i, 0)),   # h_row
                pl.BlockSpec((tm, 1), lambda i, k: (i, 0)),      # 1/deg
                _bcast_spec((d_in, d_out)),                      # Wl
                _bcast_spec((d_in, d_out)),                      # Wr
                _bcast_spec((1, d_out)),                         # bias
                _bcast_spec((1, d_out)),                         # PReLU slope
            ],
            out_specs=pl.BlockSpec((tm, d_out), lambda i, k: (i, 0)),
            scratch_shapes=[pltpu.VMEM((tm, d_in), jnp.float32)],
        ),
        compiler_params=_compiler_params(tm, tk, d_in, d_out, 2, 1),
    )(a, h, h, dinv, wl, wr, b, alpha_row)


# ------------------------------------------------------------------ wrapper
def _pick_tiles(n, tm_max, tk_max):
    """Large streamed-A tiles; tm | tk | n_pad so no rows are dropped."""
    n128 = _round_up(max(n, 1), 128)
    tk = min(tk_max, n128)           # multiple of 128 (lane dim of the A tile)
    tm = tm_max                      # power of two; shrink until it divides tk
    while tk % tm:
        tm //= 2
    n_pad = _round_up(n128, tk)
    assert tm >= 8 and tm % 8 == 0 and tk % 128 == 0
    assert n_pad % tm == 0 and n_pad % tk == 0
    return tm, tk, n_pad


def encoder_forward(x, adj_counts, inv_deg, params, *, tm_max=512, tk_max=2048):
    """x: (N, F) f32; adj_counts: (N, N) f32 in-edge counts; inv_deg: (N, 1) f32."""
    n, f = x.shape
    d = params["wskip"].shape[1]
    f_pad = _round_up(f, 128)
    d_pad = _round_up(d, 128)
    tm, tk, n_pad = _pick_tiles(n, tm_max, tk_max)

    # Lane-dense, zero-padded operands.  A holds small integer counts -> exact
    # in bf16; the 1/deg mean scale is applied in f32 inside the kernel.
    x_p = _pad2d(x, n_pad, f_pad).astype(jnp.bfloat16)
    a_p = _pad2d(adj_counts, n_pad, n_pad).astype(jnp.bfloat16)
    dinv_p = _pad2d(inv_deg, n_pad, 1).astype(jnp.float32)

    def wp(w, ri, ci):
        return _pad2d(w, ri, ci).astype(jnp.bfloat16)

    w1l, w1r = wp(params["w1l"], f_pad, d_pad), wp(params["w1r"], f_pad, d_pad)
    w2l, w2r = wp(params["w2l"], d_pad, d_pad), wp(params["w2r"], d_pad, d_pad)
    w3l, w3r = wp(params["w3l"], d_pad, d_pad), wp(params["w3r"], d_pad, d_pad)
    wskip = wp(params["wskip"], f_pad, d_pad)
    b1 = _pad2d(params["b1"], 1, d_pad)
    b2 = _pad2d(params["b2"], 1, d_pad)
    b3 = _pad2d(params["b3"], 1, d_pad)
    bskip = _pad2d(params["bskip"], 1, d_pad)
    alpha_row = jnp.broadcast_to(params["alpha"].reshape(1, 1),
                                 (1, d_pad)).astype(jnp.float32)

    # Layer 1 (also emits H1skip = x @ Wskip + bskip, fused in the finalize).
    h1, skip = _sage_layer1(a_p, x_p, dinv_p, w1l, w1r, b1, wskip, bskip,
                            alpha_row, tm=tm, tk=tk)

    # Skip adds are tiny bf16 elementwise passes; fusing them in-kernel would
    # double the k-indexed feature stream (aggregation also needs h + skip).
    h2 = _sage_layer(a_p, h1 + skip, dinv_p, w2l, w2r, b2, alpha_row,
                     tm=tm, tk=tk, extra_prelu=False)
    h3 = _sage_layer(a_p, h2 + skip, dinv_p, w3l, w3r, b3, alpha_row,
                     tm=tm, tk=tk, extra_prelu=True)
    return h3[:n, :d].astype(jnp.float32)


# --------------------------------------------------------------- graph glue
def build_adjacency(edge_index, num_nodes):
    """Dense in-edge count matrix and per-row 1/deg (0 for isolated nodes)."""
    src = edge_index[0]
    dst = edge_index[1]
    counts = jnp.zeros((num_nodes, num_nodes), jnp.float32).at[dst, src].add(1.0)
    deg = jnp.sum(counts, axis=1, keepdims=True)
    inv_deg = jnp.where(deg > 0, 1.0 / jnp.maximum(deg, 1.0), 0.0)
    return counts, inv_deg


def init_params(key, dim_features, dim_embedding):
    ks = jax.random.split(key, 12)

    def lin(k, fan_in, fan_out):
        # uniform(-1/sqrt(fan_in), 1/sqrt(fan_in)), stored pre-transposed (in, out)
        bound = 1.0 / jnp.sqrt(jnp.float32(fan_in))
        return jax.random.uniform(k, (fan_in, fan_out), jnp.float32, -bound, bound)

    def bias(k, fan_in, fan_out):
        bound = 1.0 / jnp.sqrt(jnp.float32(fan_in))
        return jax.random.uniform(k, (1, fan_out), jnp.float32, -bound, bound)

    f, d = dim_features, dim_embedding
    return {
        "wskip": lin(ks[0], f, d), "bskip": bias(ks[1], f, d),
        "w1l": lin(ks[2], f, d), "w1r": lin(ks[3], f, d), "b1": bias(ks[4], f, d),
        "w2l": lin(ks[5], d, d), "w2r": lin(ks[6], d, d), "b2": bias(ks[7], d, d),
        "w3l": lin(ks[8], d, d), "w3r": lin(ks[9], d, d), "b3": bias(ks[10], d, d),
        "alpha": jnp.full((1, 1), 0.25, jnp.float32),   # nn.PReLU() default init
    }


if __name__ == "__main__":
    key = jax.random.PRNGKey(0)
    k_x, k_e, k_p = jax.random.split(key, 3)

    num_nodes = 32
    dim_features = 16
    dim_embedding = 32
    num_edges = 96

    x = jax.random.normal(k_x, (num_nodes, dim_features), jnp.float32)
    edge_index = jax.random.randint(k_e, (2, num_edges), 0, num_nodes, jnp.int32)

    adj_counts, inv_deg = build_adjacency(edge_index, num_nodes)
    params = init_params(k_p, dim_features, dim_embedding)

    out = encoder_forward(x, adj_counts, inv_deg, params)
    jax.block_until_ready(out)
    assert out.shape == (num_nodes, dim_embedding)
    assert bool(jnp.all(jnp.isfinite(out)))
    print("KERNEL_OK")
</pallas_src>

<mosaic_0001>
module attributes {stable_mosaic.version = 11 : i64} {
  func.func @_sage1_kernel(%arg0: i32, %arg1: i32, %arg2: memref<128x128xbf16, #tpu.memory_space<vmem>>, %arg3: memref<128x128xbf16, #tpu.memory_space<vmem>>, %arg4: memref<128x128xbf16, #tpu.memory_space<vmem>>, %arg5: memref<128x1xf32, #tpu.memory_space<vmem>>, %arg6: memref<128x128xbf16, #tpu.memory_space<vmem>>, %arg7: memref<128x128xbf16, #tpu.memory_space<vmem>>, %arg8: memref<1x128xf32, #tpu.memory_space<vmem>>, %arg9: memref<128x128xbf16, #tpu.memory_space<vmem>>, %arg10: memref<1x128xf32, #tpu.memory_space<vmem>>, %arg11: memref<1x128xf32, #tpu.memory_space<vmem>>, %arg12: memref<128x128xbf16, #tpu.memory_space<vmem>>, %arg13: memref<128x128xbf16, #tpu.memory_space<vmem>>, %arg14: memref<128x128xf32, #tpu.memory_space<vmem>>) attributes {dimension_semantics = [#tpu.dimension_semantics<parallel>, #tpu.dimension_semantics<arbitrary>], iteration_bounds = array<i64: 1, 1>, scalar_prefetch = 0 : i64, scratch_operands = 1 : i64, tpu.core_type = #tpu.core_type<tc>, window_params = [{transform_indices = @transform_0, window_bounds = array<i64: 128, 128>}, {transform_indices = @transform_1, window_bounds = array<i64: 128, 128>}, {transform_indices = @transform_2, window_bounds = array<i64: 128, 128>}, {transform_indices = @transform_3, window_bounds = array<i64: 128, 1>}, {pipeline_mode = #tpu.pipeline_mode<synchronous>, transform_indices = @transform_4, window_bounds = array<i64: 128, 128>}, {pipeline_mode = #tpu.pipeline_mode<synchronous>, transform_indices = @transform_5, window_bounds = array<i64: 128, 128>}, {pipeline_mode = #tpu.pipeline_mode<synchronous>, transform_indices = @transform_6, window_bounds = array<i64: 1, 128>}, {pipeline_mode = #tpu.pipeline_mode<synchronous>, transform_indices = @transform_7, window_bounds = array<i64: 128, 128>}, {pipeline_mode = #tpu.pipeline_mode<synchronous>, transform_indices = @transform_8, window_bounds = array<i64: 1, 128>}, {pipeline_mode = #tpu.pipeline_mode<synchronous>, transform_indices = @transform_9, window_bounds = array<i64: 1, 128>}, {transform_indices = @transform_10, window_bounds = array<i64: 128, 128>}, {transform_indices = @transform_11, window_bounds = array<i64: 128, 128>}]} {
    %c0_i32 = arith.constant 0 : i32
    %0 = arith.cmpi eq, %arg1, %c0_i32 : i32
    %1 = arith.extui %0 : i1 to i32
    %c0_i32_0 = arith.constant 0 : i32
    %2 = arith.cmpi ne, %1, %c0_i32_0 : i32
    scf.if %2 {
      %cst_10 = arith.constant 0.000000e+00 : f32
      %12 = vector.broadcast %cst_10 : f32 to vector<128x128xf32>
      %c0_11 = arith.constant 0 : index
      %c0_12 = arith.constant 0 : index
      %13 = vector.load %arg14[%c0_11, %c0_12] : memref<128x128xf32, #tpu.memory_space<vmem>>, vector<128x128xf32>
      tpu.vector_store %arg14[%c0_11, %c0_12], %12 {strides = array<i32>} : memref<128x128xf32, #tpu.memory_space<vmem>>, vector<128x128xf32>,
    } else {
    }
    %c0 = arith.constant 0 : index
    %c0_1 = arith.constant 0 : index
    %3 = vector.load %arg14[%c0, %c0_1] : memref<128x128xf32, #tpu.memory_space<vmem>>, vector<128x128xf32>
    %c0_2 = arith.constant 0 : index
    %c0_3 = arith.constant 0 : index
    %4 = vector.load %arg2[%c0_2, %c0_3] : memref<128x128xbf16, #tpu.memory_space<vmem>>, vector<128x128xbf16>
    %c0_4 = arith.constant 0 : index
    %c0_5 = arith.constant 0 : index
    %5 = vector.load %arg3[%c0_4, %c0_5] : memref<128x128xbf16, #tpu.memory_space<vmem>>, vector<128x128xbf16>
    %cst = arith.constant dense<0.000000e+00> : vector<128x128xf32>
    %6 = tpu.matmul %4, %5, %cst {dimension_numbers = #tpu.dot_dimension_numbers<[1], [0], [0], [1], [0, 0, 1, 1], [], []>} : vector<128x128xbf16>, vector<128x128xbf16>, vector<128x128xf32> -> vector<128x128xf32>
    %7 = arith.addf %3, %6 : vector<128x128xf32>
    %c0_6 = arith.constant 0 : index
    %c0_7 = arith.constant 0 : index
    %8 = vector.load %arg14[%c0_6, %c0_7] : memref<128x128xf32, #tpu.memory_space<vmem>>, vector<128x128xf32>
    tpu.vector_store %arg14[%c0_6, %c0_7], %7 {strides = array<i32>} : memref<128x128xf32, #tpu.memory_space<vmem>>, vector<128x128xf32>,
    %c0_i32_8 = arith.constant 0 : i32
    %9 = arith.cmpi eq, %arg1, %c0_i32_8 : i32
    %10 = arith.extui %9 : i1 to i32
    %c0_i32_9 = arith.constant 0 : i32
    %11 = arith.cmpi ne, %10, %c0_i32_9 : i32
    scf.if %11 {
      %c0_10 = arith.constant 0 : index
      %c0_11 = arith.constant 0 : index
      %12 = vector.load %arg4[%c0_10, %c0_11] : memref<128x128xbf16, #tpu.memory_space<vmem>>, vector<128x128xbf16>
      %c0_12 = arith.constant 0 : index
      %c0_13 = arith.constant 0 : index
      %13 = vector.load %arg14[%c0_12, %c0_13] : memref<128x128xf32, #tpu.memory_space<vmem>>, vector<128x128xf32>
      %c0_14 = arith.constant 0 : index
      %c0_15 = arith.constant 0 : index
      %14 = vector.load %arg5[%c0_14, %c0_15] : memref<128x1xf32, #tpu.memory_space<vmem>>, vector<128x1xf32>
      %c0_16 = arith.constant 0 : index
      %c0_17 = arith.constant 0 : index
      %15 = vector.load %arg6[%c0_16, %c0_17] : memref<128x128xbf16, #tpu.memory_space<vmem>>, vector<128x128xbf16>
      %c0_18 = arith.constant 0 : index
      %c0_19 = arith.constant 0 : index
      %16 = vector.load %arg7[%c0_18, %c0_19] : memref<128x128xbf16, #tpu.memory_space<vmem>>, vector<128x128xbf16>
      %c0_20 = arith.constant 0 : index
      %c0_21 = arith.constant 0 : index
      %17 = vector.load %arg8[%c0_20, %c0_21] : memref<1x128xf32, #tpu.memory_space<vmem>>, vector<1x128xf32>
      %c0_22 = arith.constant 0 : index
      %c0_23 = arith.constant 0 : index
      %18 = vector.load %arg11[%c0_22, %c0_23] : memref<1x128xf32, #tpu.memory_space<vmem>>, vector<1x128xf32>
      %19 = vector.broadcast %14 : vector<128x1xf32> to vector<128x128xf32>
      %20 = arith.mulf %13, %19 : vector<128x128xf32>
      %21 = arith.truncf %20 : vector<128x128xf32> to vector<128x128xbf16>
      %cst_24 = arith.constant dense<0.000000e+00> : vector<128x128xf32>
      %22 = tpu.matmul %21, %15, %cst_24 {dimension_numbers = #tpu.dot_dimension_numbers<[1], [0], [0], [1], [0, 0, 1, 1], [], []>} : vector<128x128xbf16>, vector<128x128xbf16>, vector<128x128xf32> -> vector<128x128xf32>
      %cst_25 = arith.constant dense<0.000000e+00> : vector<128x128xf32>
      %23 = tpu.matmul %12, %16, %cst_25 {dimension_numbers = #tpu.dot_dimension_numbers<[1], [0], [0], [1], [0, 0, 1, 1], [], []>} : vector<128x128xbf16>, vector<128x128xbf16>, vector<128x128xf32> -> vector<128x128xf32>
      %24 = arith.addf %22, %23 : vector<128x128xf32>
      %25 = vector.broadcast %17 : vector<1x128xf32> to vector<128x128xf32>
      %26 = arith.addf %24, %25 : vector<128x128xf32>
      %27 = arith.mulf %26, %26 : vector<128x128xf32>
      %cst_26 = arith.constant dense<0.000000e+00> : vector<128xf32>
      %28 = vector.multi_reduction <add>, %27, %cst_26 [1] : vector<128x128xf32> to vector<128xf32>
      %29 = vector.shape_cast %28 : vector<128xf32> to vector<128x1xf32>
      %cst_27 = arith.constant 1.000000e-24 : f32
      %30 = vector.broadcast %cst_27 : f32 to vector<128x1xf32>
      %31 = arith.maximumf %29, %30 : vector<128x1xf32>
      %32 = math.rsqrt %31 : vector<128x1xf32>
      %33 = vector.broadcast %32 : vector<128x1xf32> to vector<128x128xf32>
      %34 = arith.mulf %26, %33 : vector<128x128xf32>
      %cst_28 = arith.constant 0.000000e+00 : f32
      %35 = vector.broadcast %cst_28 : f32 to vector<128x128xf32>
      %36 = arith.cmpf oge, %34, %35 : vector<128x128xf32>
      %37 = vector.broadcast %18 : vector<1x128xf32> to vector<128x128xf32>
      %38 = arith.mulf %37, %34 : vector<128x128xf32>
      %39 = arith.select %36, %34, %38 : vector<128x128xi1>, vector<128x128xf32>
      %40 = arith.truncf %39 : vector<128x128xf32> to vector<128x128xbf16>
      %c0_29 = arith.constant 0 : index
      %c0_30 = arith.constant 0 : index
      %41 = vector.load %arg12[%c0_29, %c0_30] : memref<128x128xbf16, #tpu.memory_space<vmem>>, vector<128x128xbf16>
      tpu.vector_store %arg12[%c0_29, %c0_30], %40 {strides = array<i32>} : memref<128x128xbf16, #tpu.memory_space<vmem>>, vector<128x128xbf16>,
      %c0_31 = arith.constant 0 : index
      %c0_32 = arith.constant 0 : index
      %42 = vector.load %arg9[%c0_31, %c0_32] : memref<128x128xbf16, #tpu.memory_space<vmem>>, vector<128x128xbf16>
      %cst_33 = arith.constant dense<0.000000e+00> : vector<128x128xf32>
      %43 = tpu.matmul %12, %42, %cst_33 {dimension_numbers = #tpu.dot_dimension_numbers<[1], [0], [0], [1], [0, 0, 1, 1], [], []>} : vector<128x128xbf16>, vector<128x128xbf16>, vector<128x128xf32> -> vector<128x128xf32>
      %c0_34 = arith.constant 0 : index
      %c0_35 = arith.constant 0 : index
      %44 = vector.load %arg10[%c0_34, %c0_35] : memref<1x128xf32, #tpu.memory_space<vmem>>, vector<1x128xf32>
      %45 = vector.broadcast %44 : vector<1x128xf32> to vector<128x128xf32>
      %46 = arith.addf %43, %45 : vector<128x128xf32>
      %47 = arith.truncf %46 : vector<128x128xf32> to vector<128x128xbf16>
      %c0_36 = arith.constant 0 : index
      %c0_37 = arith.constant 0 : index
      %48 = vector.load %arg13[%c0_36, %c0_37] : memref<128x128xbf16, #tpu.memory_space<vmem>>, vector<128x128xbf16>
      tpu.vector_store %arg13[%c0_36, %c0_37], %47 {strides = array<i32>} : memref<128x128xbf16, #tpu.memory_space<vmem>>, vector<128x128xbf16>,
    } else {
    }
    return
  }
  func.func @transform_0(%arg0: i32, %arg1: i32) -> (i32, i32) {
    %c0_i32 = arith.constant 0 : i32
    return %arg0, %arg1 : i32, i32
  }
  func.func @transform_1(%arg0: i32, %arg1: i32) -> (i32, i32) {
    %c0_i32 = arith.constant 0 : i32
    %c0_i32_0 = arith.constant 0 : i32
    return %arg1, %c0_i32 : i32, i32
  }
  func.func @transform_2(%arg0: i32, %arg1: i32) -> (i32, i32) {
    %c0_i32 = arith.constant 0 : i32
    %c0_i32_0 = arith.constant 0 : i32
    return %arg0, %c0_i32 : i32, i32
  }
  func.func @transform_3(%arg0: i32, %arg1: i32) -> (i32, i32) {
    %c0_i32 = arith.constant 0 : i32
    %c0_i32_0 = arith.constant 0 : i32
    return %arg0, %c0_i32 : i32, i32
  }
  func.func @transform_4(%arg0: i32, %arg1: i32) -> (i32, i32) {
    %c0_i32 = arith.constant 0 : i32
    %c0_i32_0 = arith.constant 0 : i32
    %c0_i32_1 = arith.constant 0 : i32
    return %c0_i32, %c0_i32_0 : i32, i32
  }
  func.func @transform_5(%arg0: i32, %arg1: i32) -> (i32, i32) {
    %c0_i32 = arith.constant 0 : i32
    %c0_i32_0 = arith.constant 0 : i32
    %c0_i32_1 = arith.constant 0 : i32
    return %c0_i32, %c0_i32_0 : i32, i32
  }
  func.func @transform_6(%arg0: i32, %arg1: i32) -> (i32, i32) {
    %c0_i32 = arith.constant 0 : i32
    %c0_i32_0 = arith.constant 0 : i32
    %c0_i32_1 = arith.constant 0 : i32
    return %c0_i32, %c0_i32_0 : i32, i32
  }
  func.func @transform_7(%arg0: i32, %arg1: i32) -> (i32, i32) {
    %c0_i32 = arith.constant 0 : i32
    %c0_i32_0 = arith.constant 0 : i32
    %c0_i32_1 = arith.constant 0 : i32
    return %c0_i32, %c0_i32_0 : i32, i32
  }
  func.func @transform_8(%arg0: i32, %arg1: i32) -> (i32, i32) {
    %c0_i32 = arith.constant 0 : i32
    %c0_i32_0 = arith.constant 0 : i32
    %c0_i32_1 = arith.constant 0 : i32
    return %c0_i32, %c0_i32_0 : i32, i32
  }
  func.func @transform_9(%arg0: i32, %arg1: i32) -> (i32, i32) {
    %c0_i32 = arith.constant 0 : i32
    %c0_i32_0 = arith.constant 0 : i32
    %c0_i32_1 = arith.constant 0 : i32
    return %c0_i32, %c0_i32_0 : i32, i32
  }
  func.func @transform_10(%arg0: i32, %arg1: i32) -> (i32, i32) {
    %c0_i32 = arith.constant 0 : i32
    %c0_i32_0 = arith.constant 0 : i32
    return %arg0, %c0_i32 : i32, i32
  }
  func.func @transform_11(%arg0: i32, %arg1: i32) -> (i32, i32) {
    %c0_i32 = arith.constant 0 : i32
    %c0_i32_0 = arith.constant 0 : i32
    return %arg0, %c0_i32 : i32, i32
  }
}

</mosaic_0001>

<llo_original>
// kernel: tpu_custom_call.1
$region0: #{tpu_custom_call.1}
  #allocation0 [shape = 'u32[]', space=smem, size = 0x4, offset = 0x4, fixed_abs, tag = 'smem constant byte address 0x4 - core index']
  #allocation1 [shape = 'u32[144,128]{1,0:T(1,128)}', space=vmem, size = 0x12000, scoped, tag = 'internal scratch']
  #allocation2 [shape = 'f32[128,128]{1,0:T(8,128)}', space=vmem, size = 0x10000, scoped, tag = 'scratch operand']
  %s0 = inlined_call_operand.vmem [shape: bf16[128,128], index: 0, kind: input, shape index: {}]
  %s1 = inlined_call_operand.vmem [shape: bf16[128,128], index: 1, kind: input, shape index: {}]
  %s2 = inlined_call_operand.hbm [shape: bf16[128,128], index: 2, kind: input, shape index: {}]
  %s3 = inlined_call_operand.vmem [shape: f32[128,1], index: 3, kind: input, shape index: {}]
  %s4 = inlined_call_operand.hbm [shape: bf16[128,128], index: 4, kind: input, shape index: {}]
  %s5 = inlined_call_operand.hbm [shape: bf16[128,128], index: 5, kind: input, shape index: {}]
  %s6 = inlined_call_operand.vmem [shape: f32[1,128], index: 6, kind: input, shape index: {}]
  %s7 = inlined_call_operand.hbm [shape: bf16[128,128], index: 7, kind: input, shape index: {}]
  %s8 = inlined_call_operand.vmem [shape: f32[1,128], index: 8, kind: input, shape index: {}]
  %s9 = inlined_call_operand.vmem [shape: f32[1,128], index: 9, kind: input, shape index: {}]
  %s10 = inlined_call_operand.hbm [shape: bf16[128,128], index: 10, kind: output, shape index: {0}]
  %s11 = inlined_call_operand.hbm [shape: bf16[128,128], index: 11, kind: output, shape index: {1}]
  %12 = xla_tuple %s10, %s11
  %s13 = sld [smem:[#allocation0]]
  $region82: #{tpu_custom_call.1} parent=0
    _
  %s15 = ssub.s32 1, %s13
  %s16 = scalar_select 0, %s15, %s13
  $region1: #{tpu_custom_call.1} parent=0
    #allocation3 [shape = 'u8[32768]{0}', space=vmem, size = 0x8000, scoped, tag = 'input window, operand 2, single buffered']
    #allocation4 [shape = 's32[1]{0}', space=sflag, size = 0x4, scoped, tag = 'scoped memory for tpu_custom_call.1']
    #allocation5 [shape = 's32[1]{0}', space=sflag, size = 0x4, scoped, tag = 'scoped memory for tpu_custom_call.1']
    #allocation6 [shape = 'u8[32768]{0}', space=vmem, size = 0x8000, scoped, tag = 'input window, operand 4, single buffered']
    #allocation7 [shape = 's32[1]{0}', space=sflag, size = 0x4, scoped, tag = 'scoped memory for tpu_custom_call.1']
    #allocation8 [shape = 'u8[32768]{0}', space=vmem, size = 0x8000, scoped, tag = 'input window, operand 5, single buffered']
    #allocation9 [shape = 'u8[32768]{0}', space=vmem, size = 0x8000, scoped, tag = 'input window, operand 7, single buffered']
    #allocation10 [shape = 's32[1]{0}', space=sflag, size = 0x4, scoped, tag = 'scoped memory for tpu_custom_call.1']
    #allocation11 [shape = 'u8[32768]{0}', space=vmem, size = 0x8000, scoped, tag = 'output window, operand 0, single buffered']
    #allocation12 [shape = 'u8[32768]{0}', space=vmem, size = 0x8000, scoped, tag = 'output window, operand 1, single buffered']
    #allocation13 [shape = 's32[1]{0}', space=sflag, size = 0x4, scoped, tag = 'scoped memory for tpu_custom_call.1']
    %17 = vsyncpa [#allocation4], 0
    %18 = vsyncpa [#allocation7], 0
    %19 = vsyncpa [#allocation10], 0
    %20 = vsyncpa [#allocation5], 0
    %21 = vsyncpa [#allocation13], 0
    // Predicated region
    $region2: #{tpu_custom_call.1} parent=1 // pred_check
      _
    $region3: #{tpu_custom_call.1} parent=1 // pred_check_branch
      %23 = sbr.rel (0) target = $region5
    $region4: #{tpu_custom_call.1} parent=1 // pred_region
      _
    $region5: #{tpu_custom_call.1} parent=1 // pred_fallthru
      _
    // Predicated region
    $region6: #{tpu_custom_call.1} parent=1 // pred_check
      _
    $region7: #{tpu_custom_call.1} parent=1 // pred_check_branch
      %25 = sbr.rel (0) target = $region9
    $region8: #{tpu_custom_call.1} parent=1 // pred_region
      _
    $region9: #{tpu_custom_call.1} parent=1 // pred_fallthru
      _
    // Predicated region
    $region10: #{tpu_custom_call.1} parent=1 // pred_check
      _
    $region11: #{tpu_custom_call.1} parent=1 // pred_check_branch
      %27 = sbr.rel (0) target = $region13
    $region12: #{tpu_custom_call.1} parent=1 // pred_region
      %s29 = ssub.s32 1024, 1024
      %30 = vsyncadd [#allocation4], %s29
      %s31 = sshll.u32 [#allocation3], 4
      %s32 = int_to_ptr.vmem [resolvable:$true] %s31
      %37 = dma.hbm_to_vmem [thread:$0]  %s2, 1024, %s32, [#allocation4], 64, 64, 4
    $region13: #{tpu_custom_call.1} parent=1 // pred_fallthru
      _
    // Predicated region
    $region14: #{tpu_custom_call.1} parent=1 // pred_check
      _
    $region15: #{tpu_custom_call.1} parent=1 // pred_check_branch
      %39 = sbr.rel (0) target = $region17
    $region16: #{tpu_custom_call.1} parent=1 // pred_region
      _
    $region17: #{tpu_custom_call.1} parent=1 // pred_fallthru
      _
    // Predicated region
    $region18: #{tpu_custom_call.1} parent=1 // pred_check
      _
    $region19: #{tpu_custom_call.1} parent=1 // pred_check_branch
      %41 = sbr.rel (0) target = $region21
    $region20: #{tpu_custom_call.1} parent=1 // pred_region
      %s43 = ssub.s32 1024, 1024
      %44 = vsyncadd [#allocation7], %s43
      %s45 = sshll.u32 [#allocation6], 4
      %s46 = int_to_ptr.vmem [resolvable:$true] %s45
      %51 = dma.hbm_to_vmem [thread:$0]  %s4, 1024, %s46, [#allocation7], 64, 64, 4
    $region21: #{tpu_custom_call.1} parent=1 // pred_fallthru
      _
    // Predicated region
    $region22: #{tpu_custom_call.1} parent=1 // pred_check
      _
    $region23: #{tpu_custom_call.1} parent=1 // pred_check_branch
      %53 = sbr.rel (0) target = $region25
    $region24: #{tpu_custom_call.1} parent=1 // pred_region
      %s55 = ssub.s32 1024, 1024
      %56 = vsyncadd [#allocation7], %s55
      %s57 = sshll.u32 [#allocation8], 4
      %s58 = int_to_ptr.vmem [resolvable:$true] %s57
      %63 = dma.hbm_to_vmem [thread:$0]  %s5, 1024, %s58, [#allocation7], 64, 64, 4
    $region25: #{tpu_custom_call.1} parent=1 // pred_fallthru
      _
    // Predicated region
    $region26: #{tpu_custom_call.1} parent=1 // pred_check
      _
    $region27: #{tpu_custom_call.1} parent=1 // pred_check_branch
      %65 = sbr.rel (0) target = $region29
    $region28: #{tpu_custom_call.1} parent=1 // pred_region
      _
    $region29: #{tpu_custom_call.1} parent=1 // pred_fallthru
      _
    // Predicated region
    $region30: #{tpu_custom_call.1} parent=1 // pred_check
      _
    $region31: #{tpu_custom_call.1} parent=1 // pred_check_branch
      %67 = sbr.rel (0) target = $region33
    $region32: #{tpu_custom_call.1} parent=1 // pred_region
      %s69 = ssub.s32 1024, 1024
      %70 = vsyncadd [#allocation10], %s69
      %s71 = sshll.u32 [#allocation9], 4
      %s72 = int_to_ptr.vmem [resolvable:$true] %s71
      %77 = dma.hbm_to_vmem [thread:$0]  %s7, 1024, %s72, [#allocation10], 64, 64, 4
    $region33: #{tpu_custom_call.1} parent=1 // pred_fallthru
      _
    // Predicated region
    $region34: #{tpu_custom_call.1} parent=1 // pred_check
      _
    $region35: #{tpu_custom_call.1} parent=1 // pred_check_branch
      %79 = sbr.rel (0) target = $region37
    $region36: #{tpu_custom_call.1} parent=1 // pred_region
      _
    $region37: #{tpu_custom_call.1} parent=1 // pred_fallthru
      _
    // Predicated region
    $region38: #{tpu_custom_call.1} parent=1 // pred_check
      _
    $region39: #{tpu_custom_call.1} parent=1 // pred_check_branch
      %81 = sbr.rel (0) target = $region41
    $region40: #{tpu_custom_call.1} parent=1 // pred_region
      _
    $region41: #{tpu_custom_call.1} parent=1 // pred_fallthru
      _
    // Predicated region
    $region42: #{tpu_custom_call.1} parent=1 // pred_check
      _
    $region43: #{tpu_custom_call.1} parent=1 // pred_check_branch
      %83 = sbr.rel (0) target = $region45
    $region44: #{tpu_custom_call.1} parent=1 // pred_region
      %84 = dma.done [#allocation4], 1024
    $region45: #{tpu_custom_call.1} parent=1 // pred_fallthru
      _
    // Predicated region
    $region46: #{tpu_custom_call.1} parent=1 // pred_check
      _
    $region47: #{tpu_custom_call.1} parent=1 // pred_check_branch
      %86 = sbr.rel (0) target = $region49
    $region48: #{tpu_custom_call.1} parent=1 // pred_region
      %87 = dma.done [#allocation7], 1024
    $region49: #{tpu_custom_call.1} parent=1 // pred_fallthru
      _
    // Predicated region
    $region50: #{tpu_custom_call.1} parent=1 // pred_check
      _
    $region51: #{tpu_custom_call.1} parent=1 // pred_check_branch
      %89 = sbr.rel (0) target = $region53
    $region52: #{tpu_custom_call.1} parent=1 // pred_region
      %90 = dma.done [#allocation7], 1024
    $region53: #{tpu_custom_call.1} parent=1 // pred_fallthru
      _
    // Predicated region
    $region54: #{tpu_custom_call.1} parent=1 // pred_check
      _
    $region55: #{tpu_custom_call.1} parent=1 // pred_check_branch
      %92 = sbr.rel (0) target = $region57
    $region56: #{tpu_custom_call.1} parent=1 // pred_region
      %93 = dma.done [#allocation10], 1024
    $region57: #{tpu_custom_call.1} parent=1 // pred_fallthru
      _
    %p95 = scmp.eq.s32.totalorder 0, 0
    // Predicated region
    $region58: #{tpu_custom_call.1} parent=1 // pred_check
      %p96 = pneg %p95
    $region59: #{tpu_custom_call.1} parent=1 // pred_check_branch
      %98 = sbr.rel (%p96) target = $region61
    $region60: #{tpu_custom_call.1} parent=1 // pred_region
      %99 = vst [vmem:[#allocation2] sm:$0xff] 0.0
      %100 = vst [vmem:[#allocation2 + $0x8] sm:$0xff] 0.0
      %101 = vst [vmem:[#allocation2 + $0x10] sm:$0xff] 0.0
      %102 = vst [vmem:[#allocation2 + $0x18] sm:$0xff] 0.0
      %103 = vst [vmem:[#allocation2 + $0x20] sm:$0xff] 0.0
      %104 = vst [vmem:[#allocation2 + $0x28] sm:$0xff] 0.0
      %105 = vst [vmem:[#allocation2 + $0x30] sm:$0xff] 0.0
      %106 = vst [vmem:[#allocation2 + $0x38] sm:$0xff] 0.0
      %107 = vst [vmem:[#allocation2 + $0x40] sm:$0xff] 0.0
      %108 = vst [vmem:[#allocation2 + $0x48] sm:$0xff] 0.0
      %109 = vst [vmem:[#allocation2 + $0x50] sm:$0xff] 0.0
      %110 = vst [vmem:[#allocation2 + $0x58] sm:$0xff] 0.0
      %111 = vst [vmem:[#allocation2 + $0x60] sm:$0xff] 0.0
      %112 = vst [vmem:[#allocation2 + $0x68] sm:$0xff] 0.0
      %113 = vst [vmem:[#allocation2 + $0x70] sm:$0xff] 0.0
      %114 = vst [vmem:[#allocation2 + $0x78] sm:$0xff] 0.0
    $region61: #{tpu_custom_call.1} parent=1 // pred_fallthru
      _
    %v115 = vld [vmem:[#allocation2] sm:$0xff]
    %v116 = vld [vmem:[#allocation2 + $0x8] sm:$0xff]
    %v117 = vld [vmem:[#allocation2 + $0x10] sm:$0xff]
    %v118 = vld [vmem:[#allocation2 + $0x18] sm:$0xff]
    %v119 = vld [vmem:[#allocation2 + $0x20] sm:$0xff]
    %v120 = vld [vmem:[#allocation2 + $0x28] sm:$0xff]
    %v121 = vld [vmem:[#allocation2 + $0x30] sm:$0xff]
    %v122 = vld [vmem:[#allocation2 + $0x38] sm:$0xff]
    %v123 = vld [vmem:[#allocation2 + $0x40] sm:$0xff]
    %v124 = vld [vmem:[#allocation2 + $0x48] sm:$0xff]
    %v125 = vld [vmem:[#allocation2 + $0x50] sm:$0xff]
    %v126 = vld [vmem:[#allocation2 + $0x58] sm:$0xff]
    %v127 = vld [vmem:[#allocation2 + $0x60] sm:$0xff]
    %v128 = vld [vmem:[#allocation2 + $0x68] sm:$0xff]
    %v129 = vld [vmem:[#allocation2 + $0x70] sm:$0xff]
    %v130 = vld [vmem:[#allocation2 + $0x78] sm:$0xff]
    %v131 = vld [vmem:[%s0] sm:$0xf]
    %v132 = vld [vmem:[%s0 + $0x4] sm:$0xf]
    %v133 = vld [vmem:[%s0 + $0x8] sm:$0xf]
    %v134 = vld [vmem:[%s0 + $0xc] sm:$0xf]
    %v135 = vld [vmem:[%s0 + $0x10] sm:$0xf]
    %v136 = vld [vmem:[%s0 + $0x14] sm:$0xf]
    %v137 = vld [vmem:[%s0 + $0x18] sm:$0xf]
    %v138 = vld [vmem:[%s0 + $0x1c] sm:$0xf]
    %v139 = vld [vmem:[%s0 + $0x20] sm:$0xf]
    %v140 = vld [vmem:[%s0 + $0x24] sm:$0xf]
    %v141 = vld [vmem:[%s0 + $0x28] sm:$0xf]
    %v142 = vld [vmem:[%s0 + $0x2c] sm:$0xf]
    %v143 = vld [vmem:[%s0 + $0x30] sm:$0xf]
    %v144 = vld [vmem:[%s0 + $0x34] sm:$0xf]
    %v145 = vld [vmem:[%s0 + $0x38] sm:$0xf]
    %v146 = vld [vmem:[%s0 + $0x3c] sm:$0xf]
    %v147 = vld [vmem:[%s1] sm:$0xf]
    %v148 = vld [vmem:[%s1 + $0x4] sm:$0xf]
    %v149 = vld [vmem:[%s1 + $0x8] sm:$0xf]
    %v150 = vld [vmem:[%s1 + $0xc] sm:$0xf]
    %v151 = vld [vmem:[%s1 + $0x10] sm:$0xf]
    %v152 = vld [vmem:[%s1 + $0x14] sm:$0xf]
    %v153 = vld [vmem:[%s1 + $0x18] sm:$0xf]
    %v154 = vld [vmem:[%s1 + $0x1c] sm:$0xf]
    %v155 = vld [vmem:[%s1 + $0x20] sm:$0xf]
    %v156 = vld [vmem:[%s1 + $0x24] sm:$0xf]
    %v157 = vld [vmem:[%s1 + $0x28] sm:$0xf]
    %v158 = vld [vmem:[%s1 + $0x2c] sm:$0xf]
    %v159 = vld [vmem:[%s1 + $0x30] sm:$0xf]
    %v160 = vld [vmem:[%s1 + $0x34] sm:$0xf]
    %v161 = vld [vmem:[%s1 + $0x38] sm:$0xf]
    %v162 = vld [vmem:[%s1 + $0x3c] sm:$0xf]
    %v179 = vunpack.c.l.b16 %v131
    %v180 = vunpack.c.l.b16 %v132
    %v181 = vunpack.c.l.b16 %v133
    %v182 = vunpack.c.l.b16 %v134
    %v183 = vunpack.c.l.b16 %v135
    %v184 = vunpack.c.l.b16 %v136
    %v185 = vunpack.c.l.b16 %v137
    %v186 = vunpack.c.l.b16 %v138
    %v187 = vunpack.c.l.b16 %v139
    %v188 = vunpack.c.l.b16 %v140
    %v189 = vunpack.c.l.b16 %v141
    %v190 = vunpack.c.l.b16 %v142
    %v191 = vunpack.c.l.b16 %v143
    %v192 = vunpack.c.l.b16 %v144
    %v193 = vunpack.c.l.b16 %v145
    %v194 = vunpack.c.l.b16 %v146
    %v195 = vpack.c.b16 %v180, %v179
    %v196 = vpack.c.b16 %v182, %v181
    %v197 = vpack.c.b16 %v184, %v183
    %v198 = vpack.c.b16 %v186, %v185
    %v199 = vpack.c.b16 %v188, %v187
    %v200 = vpack.c.b16 %v190, %v189
    %v201 = vpack.c.b16 %v192, %v191
    %v202 = vpack.c.b16 %v194, %v193
    %v227 = vunpack.c.l.b16 %v147
    %v228 = vunpack.c.l.b16 %v148
    %v229 = vunpack.c.l.b16 %v149
    %v230 = vunpack.c.l.b16 %v150
    %v231 = vunpack.c.l.b16 %v151
    %v232 = vunpack.c.l.b16 %v152
    %v233 = vunpack.c.l.b16 %v153
    %v234 = vunpack.c.l.b16 %v154
    %v235 = vunpack.c.l.b16 %v155
    %v236 = vunpack.c.l.b16 %v156
    %v237 = vunpack.c.l.b16 %v157
    %v238 = vunpack.c.l.b16 %v158
    %v239 = vunpack.c.l.b16 %v159
    %v240 = vunpack.c.l.b16 %v160
    %v241 = vunpack.c.l.b16 %v161
    %v242 = vunpack.c.l.b16 %v162
    %v243 = vpack.c.b16 %v228, %v227
    %v244 = vpack.c.b16 %v230, %v229
    %v245 = vpack.c.b16 %v232, %v231
    %v246 = vpack.c.b16 %v234, %v233
    %v247 = vpack.c.b16 %v236, %v235
    %v248 = vpack.c.b16 %v238, %v237
    %v249 = vpack.c.b16 %v240, %v239
    %v250 = vpack.c.b16 %v242, %v241
    %259 = vmatprep.subr.bf16.mxu0 0
    %260 = vmatpush1.bf16.msra.mxu0 %v243
    %261 = vmatprep.subr.bf16.mxu0 0
    %262 = vmatpush1.bf16.msra.mxu0 %v244
    %263 = vmatprep.subr.bf16.mxu0 0
    %264 = vmatpush1.bf16.msra.mxu0 %v245
    %265 = vmatprep.subr.bf16.mxu0 0
    %266 = vmatpush1.bf16.msra.mxu0 %v246
    %267 = vmatprep.subr.bf16.mxu0 0
    %268 = vmatpush1.bf16.msra.mxu0 %v247
    %269 = vmatprep.subr.bf16.mxu0 0
    %270 = vmatpush1.bf16.msra.mxu0 %v248
    %271 = vmatprep.subr.bf16.mxu0 0
    %272 = vmatpush1.bf16.msra.mxu0 %v249
    %273 = vmatprep.subr.bf16.mxu0 0
    %274 = vmatpush1.bf16.msra.mxu0 %v250
    %275 = vmatprep.subr.bf16.mxu0 0
    %276 = vmatpush1.bf16.msra.mxu0 0
    %277 = vmatprep.subr.bf16.mxu0 0
    %278 = vmatpush1.bf16.msra.mxu0 0
    %279 = vmatprep.subr.bf16.mxu0 0
    %280 = vmatpush1.bf16.msra.mxu0 0
    %281 = vmatprep.subr.bf16.mxu0 0
    %282 = vmatpush1.bf16.msra.mxu0 0
    %283 = vmatprep.subr.bf16.mxu0 0
    %284 = vmatpush1.bf16.msra.mxu0 0
    %285 = vmatprep.subr.bf16.mxu0 0
    %286 = vmatpush1.bf16.msra.mxu0 0
    %287 = vmatprep.subr.bf16.mxu0 0
    %288 = vmatpush1.bf16.msra.mxu0 0
    %289 = vmatprep.subr.bf16.mxu0 0
    %290 = vmatpush1.bf16.msra.mxu0 0
    %291 = vmatprep.mubr.bf16.mxu0 0
    %292 = vmatmul.mubr.bf16.gmra.mrb[0].mxu0 %v195
    %v293 = vpop.f32.mrb[0].mxu0
    %v294 = vadd.f32 0.0, %v293
    %v295 = vpop.f32.mrb[0].mxu0
    %v296 = vpop.f32.mrb[0].mxu0
    %v297 = vadd.f32 0.0, %v296
    %v298 = vpop.f32.mrb[0].mxu0
    %299 = vmatprep.mubr.bf16.mxu0 0
    %300 = vmatmul.mubr.bf16.gmra.mrb[0].mxu0 %v196
    %v301 = vpop.f32.mrb[0].mxu0
    %v302 = vadd.f32 0.0, %v301
    %v303 = vpop.f32.mrb[0].mxu0
    %v304 = vpop.f32.mrb[0].mxu0
    %v305 = vadd.f32 0.0, %v304
    %v306 = vpop.f32.mrb[0].mxu0
    %307 = vmatprep.mubr.bf16.mxu0 0
    %308 = vmatmul.mubr.bf16.gmra.mrb[0].mxu0 %v197
    %v309 = vpop.f32.mrb[0].mxu0
    %v310 = vadd.f32 0.0, %v309
    %v311 = vpop.f32.mrb[0].mxu0
    %v312 = vpop.f32.mrb[0].mxu0
    %v313 = vadd.f32 0.0, %v312
    %v314 = vpop.f32.mrb[0].mxu0
    %315 = vmatprep.mubr.bf16.mxu0 0
    %316 = vmatmul.mubr.bf16.gmra.mrb[0].mxu0 %v198
    %v317 = vpop.f32.mrb[0].mxu0
    %v318 = vadd.f32 0.0, %v317
    %v319 = vpop.f32.mrb[0].mxu0
    %v320 = vpop.f32.mrb[0].mxu0
    %v321 = vadd.f32 0.0, %v320
    %v322 = vpop.f32.mrb[0].mxu0
    %323 = vmatprep.mubr.bf16.mxu0 0
    %324 = vmatmul.mubr.bf16.gmra.mrb[0].mxu0 %v199
    %v325 = vpop.f32.mrb[0].mxu0
    %v326 = vadd.f32 0.0, %v325
    %v327 = vpop.f32.mrb[0].mxu0
    %v328 = vpop.f32.mrb[0].mxu0
    %v329 = vadd.f32 0.0, %v328
    %v330 = vpop.f32.mrb[0].mxu0
    %331 = vmatprep.mubr.bf16.mxu0 0
    %332 = vmatmul.mubr.bf16.gmra.mrb[0].mxu0 %v200
    %v333 = vpop.f32.mrb[0].mxu0
    %v334 = vadd.f32 0.0, %v333
    %v335 = vpop.f32.mrb[0].mxu0
    %v336 = vpop.f32.mrb[0].mxu0
    %v337 = vadd.f32 0.0, %v336
    %v338 = vpop.f32.mrb[0].mxu0
    %339 = vmatprep.mubr.bf16.mxu0 0
    %340 = vmatmul.mubr.bf16.gmra.mrb[0].mxu0 %v201
    %v341 = vpop.f32.mrb[0].mxu0
    %v342 = vadd.f32 0.0, %v341
    %v343 = vpop.f32.mrb[0].mxu0
    %v344 = vpop.f32.mrb[0].mxu0
    %v345 = vadd.f32 0.0, %v344
    %v346 = vpop.f32.mrb[0].mxu0
    %347 = vmatprep.mubr.bf16.mxu0 0
    %348 = vmatmul.mubr.bf16.gmra.mrb[0].mxu0 %v202
    %v349 = vpop.f32.mrb[0].mxu0
    %v350 = vadd.f32 0.0, %v349
    %v351 = vpop.f32.mrb[0].mxu0
    %v352 = vpop.f32.mrb[0].mxu0
    %v353 = vadd.f32 0.0, %v352
    %v354 = vpop.f32.mrb[0].mxu0
    %355 = vdwg.mxu0
    %v356 = vadd.f32 %v115, %v294
    %v357 = vadd.f32 %v116, %v297
    %v358 = vadd.f32 %v117, %v302
    %v359 = vadd.f32 %v118, %v305
    %v360 = vadd.f32 %v119, %v310
    %v361 = vadd.f32 %v120, %v313
    %v362 = vadd.f32 %v121, %v318
    %v363 = vadd.f32 %v122, %v321
    %v364 = vadd.f32 %v123, %v326
    %v365 = vadd.f32 %v124, %v329
    %v366 = vadd.f32 %v125, %v334
    %v367 = vadd.f32 %v126, %v337
    %v368 = vadd.f32 %v127, %v342
    %v369 = vadd.f32 %v128, %v345
    %v370 = vadd.f32 %v129, %v350
    %v371 = vadd.f32 %v130, %v353
    %372 = vst [vmem:[#allocation2] sm:$0xff] %v356
    %373 = vst [vmem:[#allocation2 + $0x8] sm:$0xff] %v357
    %374 = vst [vmem:[#allocation2 + $0x10] sm:$0xff] %v358
    %375 = vst [vmem:[#allocation2 + $0x18] sm:$0xff] %v359
    %376 = vst [vmem:[#allocation2 + $0x20] sm:$0xff] %v360
    %377 = vst [vmem:[#allocation2 + $0x28] sm:$0xff] %v361
    %378 = vst [vmem:[#allocation2 + $0x30] sm:$0xff] %v362
    %379 = vst [vmem:[#allocation2 + $0x38] sm:$0xff] %v363
    %380 = vst [vmem:[#allocation2 + $0x40] sm:$0xff] %v364
    %381 = vst [vmem:[#allocation2 + $0x48] sm:$0xff] %v365
    %382 = vst [vmem:[#allocation2 + $0x50] sm:$0xff] %v366
    %383 = vst [vmem:[#allocation2 + $0x58] sm:$0xff] %v367
    %384 = vst [vmem:[#allocation2 + $0x60] sm:$0xff] %v368
    %385 = vst [vmem:[#allocation2 + $0x68] sm:$0xff] %v369
    %386 = vst [vmem:[#allocation2 + $0x70] sm:$0xff] %v370
    %387 = vst [vmem:[#allocation2 + $0x78] sm:$0xff] %v371
    // Predicated region
    $region62: #{tpu_custom_call.1} parent=1 // pred_check
      %p388 = pneg %p95
    $region63: #{tpu_custom_call.1} parent=1 // pred_check_branch
      %390 = sbr.rel (%p388) target = $region65
    $region64: #{tpu_custom_call.1} parent=1 // pred_region
      %v391 = vld [vmem:[#allocation3] sm:$0xf]
      %v392 = vld [vmem:[#allocation3 + $0x4] sm:$0xf]
      %v393 = vld [vmem:[#allocation3 + $0x8] sm:$0xf]
      %v394 = vld [vmem:[#allocation3 + $0xc] sm:$0xf]
      %v395 = vld [vmem:[#allocation3 + $0x10] sm:$0xf]
      %v396 = vld [vmem:[#allocation3 + $0x14] sm:$0xf]
      %v397 = vld [vmem:[#allocation3 + $0x18] sm:$0xf]
      %v398 = vld [vmem:[#allocation3 + $0x1c] sm:$0xf]
      %v399 = vld [vmem:[#allocation3 + $0x20] sm:$0xf]
      %v400 = vld [vmem:[#allocation3 + $0x24] sm:$0xf]
      %v401 = vld [vmem:[#allocation3 + $0x28] sm:$0xf]
      %v402 = vld [vmem:[#allocation3 + $0x2c] sm:$0xf]
      %v403 = vld [vmem:[#allocation3 + $0x30] sm:$0xf]
      %v404 = vld [vmem:[#allocation3 + $0x34] sm:$0xf]
      %v405 = vld [vmem:[#allocation3 + $0x38] sm:$0xf]
      %v406 = vld [vmem:[#allocation3 + $0x3c] sm:$0xf]
      %v407 = vld [vmem:[#allocation2] sm:$0xff]
      %v408 = vld [vmem:[#allocation2 + $0x8] sm:$0xff]
      %v409 = vld [vmem:[#allocation2 + $0x10] sm:$0xff]
      %v410 = vld [vmem:[#allocation2 + $0x18] sm:$0xff]
      %v411 = vld [vmem:[#allocation2 + $0x20] sm:$0xff]
      %v412 = vld [vmem:[#allocation2 + $0x28] sm:$0xff]
      %v413 = vld [vmem:[#allocation2 + $0x30] sm:$0xff]
      %v414 = vld [vmem:[#allocation2 + $0x38] sm:$0xff]
      %v415 = vld [vmem:[#allocation2 + $0x40] sm:$0xff]
      %v416 = vld [vmem:[#allocation2 + $0x48] sm:$0xff]
      %v417 = vld [vmem:[#allocation2 + $0x50] sm:$0xff]
      %v418 = vld [vmem:[#allocation2 + $0x58] sm:$0xff]
      %v419 = vld [vmem:[#allocation2 + $0x60] sm:$0xff]
      %v420 = vld [vmem:[#allocation2 + $0x68] sm:$0xff]
      %v421 = vld [vmem:[#allocation2 + $0x70] sm:$0xff]
      %v422 = vld [vmem:[#allocation2 + $0x78] sm:$0xff]
      %v423 = vld [vmem:[%s3] sm:$0xff]
      %v424 = vld [vmem:[%s3 + $0x8] sm:$0xff]
      %v425 = vld [vmem:[%s3 + $0x10] sm:$0xff]
      %v426 = vld [vmem:[%s3 + $0x18] sm:$0xff]
      %v427 = vld [vmem:[%s3 + $0x20] sm:$0xff]
      %v428 = vld [vmem:[%s3 + $0x28] sm:$0xff]
      %v429 = vld [vmem:[%s3 + $0x30] sm:$0xff]
      %v430 = vld [vmem:[%s3 + $0x38] sm:$0xff]
      %v431 = vld [vmem:[%s3 + $0x40] sm:$0xff]
      %v432 = vld [vmem:[%s3 + $0x48] sm:$0xff]
      %v433 = vld [vmem:[%s3 + $0x50] sm:$0xff]
      %v434 = vld [vmem:[%s3 + $0x58] sm:$0xff]
      %v435 = vld [vmem:[%s3 + $0x60] sm:$0xff]
      %v436 = vld [vmem:[%s3 + $0x68] sm:$0xff]
      %v437 = vld [vmem:[%s3 + $0x70] sm:$0xff]
      %v438 = vld [vmem:[%s3 + $0x78] sm:$0xff]
      %v439 = vld [vmem:[#allocation6] sm:$0xf]
      %v440 = vld [vmem:[#allocation6 + $0x4] sm:$0xf]
      %v441 = vld [vmem:[#allocation6 + $0x8] sm:$0xf]
      %v442 = vld [vmem:[#allocation6 + $0xc] sm:$0xf]
      %v443 = vld [vmem:[#allocation6 + $0x10] sm:$0xf]
      %v444 = vld [vmem:[#allocation6 + $0x14] sm:$0xf]
      %v445 = vld [vmem:[#allocation6 + $0x18] sm:$0xf]
      %v446 = vld [vmem:[#allocation6 + $0x1c] sm:$0xf]
      %v447 = vld [vmem:[#allocation6 + $0x20] sm:$0xf]
      %v448 = vld [vmem:[#allocation6 + $0x24] sm:$0xf]
      %v449 = vld [vmem:[#allocation6 + $0x28] sm:$0xf]
      %v450 = vld [vmem:[#allocation6 + $0x2c] sm:$0xf]
      %v451 = vld [vmem:[#allocation6 + $0x30] sm:$0xf]
      %v452 = vld [vmem:[#allocation6 + $0x34] sm:$0xf]
      %v453 = vld [vmem:[#allocation6 + $0x38] sm:$0xf]
      %v454 = vld [vmem:[#allocation6 + $0x3c] sm:$0xf]
      %v455 = vld [vmem:[#allocation8] sm:$0xf]
      %v456 = vld [vmem:[#allocation8 + $0x4] sm:$0xf]
      %v457 = vld [vmem:[#allocation8 + $0x8] sm:$0xf]
      %v458 = vld [vmem:[#allocation8 + $0xc] sm:$0xf]
      %v459 = vld [vmem:[#allocation8 + $0x10] sm:$0xf]
      %v460 = vld [vmem:[#allocation8 + $0x14] sm:$0xf]
      %v461 = vld [vmem:[#allocation8 + $0x18] sm:$0xf]
      %v462 = vld [vmem:[#allocation8 + $0x1c] sm:$0xf]
      %v463 = vld [vmem:[#allocation8 + $0x20] sm:$0xf]
      %v464 = vld [vmem:[#allocation8 + $0x24] sm:$0xf]
      %v465 = vld [vmem:[#allocation8 + $0x28] sm:$0xf]
      %v466 = vld [vmem:[#allocation8 + $0x2c] sm:$0xf]
      %v467 = vld [vmem:[#allocation8 + $0x30] sm:$0xf]
      %v468 = vld [vmem:[#allocation8 + $0x34] sm:$0xf]
      %v469 = vld [vmem:[#allocation8 + $0x38] sm:$0xf]
      %v470 = vld [vmem:[#allocation8 + $0x3c] sm:$0xf]
      %v471 = vld [vmem:[%s6] sm:$0x1]
      %v472 = vld [vmem:[%s9] sm:$0x1]
      %474 = vset.pattern.permute.xlu0 0
      %475 = vperm.xlu0 %474, %v423
      %v476 = vpop.permute.xlu0 %475
      %479 = vset.pattern.permute.xlu0 0
      %480 = vperm.xlu0 %479, %v424
      %v481 = vpop.permute.xlu0 %480
      %484 = vset.pattern.permute.xlu0 0
      %485 = vperm.xlu0 %484, %v425
      %v486 = vpop.permute.xlu0 %485
      %489 = vset.pattern.permute.xlu0 0
      %490 = vperm.xlu0 %489, %v426
      %v491 = vpop.permute.xlu0 %490
      %494 = vset.pattern.permute.xlu0 0
      %495 = vperm.xlu0 %494, %v427
      %v496 = vpop.permute.xlu0 %495
      %499 = vset.pattern.permute.xlu0 0
      %500 = vperm.xlu0 %499, %v428
      %v501 = vpop.permute.xlu0 %500
      %504 = vset.pattern.permute.xlu0 0
      %505 = vperm.xlu0 %504, %v429
      %v506 = vpop.permute.xlu0 %505
      %509 = vset.pattern.permute.xlu0 0
      %510 = vperm.xlu0 %509, %v430
      %v511 = vpop.permute.xlu0 %510
      %514 = vset.pattern.permute.xlu0 0
      %515 = vperm.xlu0 %514, %v431
      %v516 = vpop.permute.xlu0 %515
      %519 = vset.pattern.permute.xlu0 0
      %520 = vperm.xlu0 %519, %v432
      %v521 = vpop.permute.xlu0 %520
      %524 = vset.pattern.permute.xlu0 0
      %525 = vperm.xlu0 %524, %v433
      %v526 = vpop.permute.xlu0 %525
      %529 = vset.pattern.permute.xlu0 0
      %530 = vperm.xlu0 %529, %v434
      %v531 = vpop.permute.xlu0 %530
      %534 = vset.pattern.permute.xlu0 0
      %535 = vperm.xlu0 %534, %v435
      %v536 = vpop.permute.xlu0 %535
      %539 = vset.pattern.permute.xlu0 0
      %540 = vperm.xlu0 %539, %v436
      %v541 = vpop.permute.xlu0 %540
      %544 = vset.pattern.permute.xlu0 0
      %545 = vperm.xlu0 %544, %v437
      %v546 = vpop.permute.xlu0 %545
      %549 = vset.pattern.permute.xlu0 0
      %550 = vperm.xlu0 %549, %v438
      %v551 = vpop.permute.xlu0 %550
      %v553 = vmul.f32 %v407, %v476
      %v554 = vmul.f32 %v408, %v481
      %v555 = vmul.f32 %v409, %v486
      %v556 = vmul.f32 %v410, %v491
      %v557 = vmul.f32 %v411, %v496
      %v558 = vmul.f32 %v412, %v501
      %v559 = vmul.f32 %v413, %v506
      %v560 = vmul.f32 %v414, %v511
      %v561 = vmul.f32 %v415, %v516
      %v562 = vmul.f32 %v416, %v521
      %v563 = vmul.f32 %v417, %v526
      %v564 = vmul.f32 %v418, %v531
      %v565 = vmul.f32 %v419, %v536
      %v566 = vmul.f32 %v420, %v541
      %v567 = vmul.f32 %v421, %v546
      %v568 = vmul.f32 %v422, %v551
      %v569 = vpack.c.bf16 %v554, %v553
      %v570 = vpack.c.bf16 %v556, %v555
      %v571 = vpack.c.bf16 %v558, %v557
      %v572 = vpack.c.bf16 %v560, %v559
      %v573 = vpack.c.bf16 %v562, %v561
      %v574 = vpack.c.bf16 %v564, %v563
      %v575 = vpack.c.bf16 %v566, %v565
      %v576 = vpack.c.bf16 %v568, %v567
      %v593 = vunpack.c.l.b16 %v391
      %v594 = vunpack.c.l.b16 %v392
      %v595 = vunpack.c.l.b16 %v393
      %v596 = vunpack.c.l.b16 %v394
      %v597 = vunpack.c.l.b16 %v395
      %v598 = vunpack.c.l.b16 %v396
      %v599 = vunpack.c.l.b16 %v397
      %v600 = vunpack.c.l.b16 %v398
      %v601 = vunpack.c.l.b16 %v399
      %v602 = vunpack.c.l.b16 %v400
      %v603 = vunpack.c.l.b16 %v401
      %v604 = vunpack.c.l.b16 %v402
      %v605 = vunpack.c.l.b16 %v403
      %v606 = vunpack.c.l.b16 %v404
      %v607 = vunpack.c.l.b16 %v405
      %v608 = vunpack.c.l.b16 %v406
      %v609 = vpack.c.b16 %v594, %v593
      %v610 = vpack.c.b16 %v596, %v595
      %v611 = vpack.c.b16 %v598, %v597
      %v612 = vpack.c.b16 %v600, %v599
      %v613 = vpack.c.b16 %v602, %v601
      %v614 = vpack.c.b16 %v604, %v603
      %v615 = vpack.c.b16 %v606, %v605
      %v616 = vpack.c.b16 %v608, %v607
      %v641 = vunpack.c.l.b16 %v455
      %v642 = vunpack.c.l.b16 %v456
      %v643 = vunpack.c.l.b16 %v457
      %v644 = vunpack.c.l.b16 %v458
      %v645 = vunpack.c.l.b16 %v459
      %v646 = vunpack.c.l.b16 %v460
      %v647 = vunpack.c.l.b16 %v461
      %v648 = vunpack.c.l.b16 %v462
      %v649 = vunpack.c.l.b16 %v463
      %v650 = vunpack.c.l.b16 %v464
      %v651 = vunpack.c.l.b16 %v465
      %v652 = vunpack.c.l.b16 %v466
      %v653 = vunpack.c.l.b16 %v467
      %v654 = vunpack.c.l.b16 %v468
      %v655 = vunpack.c.l.b16 %v469
      %v656 = vunpack.c.l.b16 %v470
      %v657 = vpack.c.b16 %v642, %v641
      %v658 = vpack.c.b16 %v644, %v643
      %v659 = vpack.c.b16 %v646, %v645
      %v660 = vpack.c.b16 %v648, %v647
      %v661 = vpack.c.b16 %v650, %v649
      %v662 = vpack.c.b16 %v652, %v651
      %v663 = vpack.c.b16 %v654, %v653
      %v664 = vpack.c.b16 %v656, %v655
      %673 = vmatprep.subr.bf16.mxu0 0
      %674 = vmatpush1.bf16.msra.mxu0 %v657
      %675 = vmatprep.subr.bf16.mxu0 0
      %676 = vmatpush1.bf16.msra.mxu0 %v658
      %677 = vmatprep.subr.bf16.mxu0 0
      %678 = vmatpush1.bf16.msra.mxu0 %v659
      %679 = vmatprep.subr.bf16.mxu0 0
      %680 = vmatpush1.bf16.msra.mxu0 %v660
      %681 = vmatprep.subr.bf16.mxu0 0
      %682 = vmatpush1.bf16.msra.mxu0 %v661
      %683 = vmatprep.subr.bf16.mxu0 0
      %684 = vmatpush1.bf16.msra.mxu0 %v662
      %685 = vmatprep.subr.bf16.mxu0 0
      %686 = vmatpush1.bf16.msra.mxu0 %v663
      %687 = vmatprep.subr.bf16.mxu0 0
      %688 = vmatpush1.bf16.msra.mxu0 %v664
      %689 = vmatprep.subr.bf16.mxu0 0
      %690 = vmatpush1.bf16.msra.mxu0 0
      %691 = vmatprep.subr.bf16.mxu0 0
      %692 = vmatpush1.bf16.msra.mxu0 0
      %693 = vmatprep.subr.bf16.mxu0 0
      %694 = vmatpush1.bf16.msra.mxu0 0
      %695 = vmatprep.subr.bf16.mxu0 0
      %696 = vmatpush1.bf16.msra.mxu0 0
      %697 = vmatprep.subr.bf16.mxu0 0
      %698 = vmatpush1.bf16.msra.mxu0 0
      %699 = vmatprep.subr.bf16.mxu0 0
      %700 = vmatpush1.bf16.msra.mxu0 0
      %701 = vmatprep.subr.bf16.mxu0 0
      %702 = vmatpush1.bf16.msra.mxu0 0
      %703 = vmatprep.subr.bf16.mxu0 0
      %704 = vmatpush1.bf16.msra.mxu0 0
      %705 = vmatprep.mubr.bf16.mxu0 0
      %706 = vmatmul.mubr.bf16.gmra.mrb[0].mxu0 %v609
      %v707 = vpop.f32.mrb[0].mxu0
      %v708 = vadd.f32 0.0, %v707
      %v709 = vpop.f32.mrb[0].mxu0
      %v710 = vpop.f32.mrb[0].mxu0
      %v711 = vadd.f32 0.0, %v710
      %v712 = vpop.f32.mrb[0].mxu0
      %713 = vmatprep.mubr.bf16.mxu0 0
      %714 = vmatmul.mubr.bf16.gmra.mrb[0].mxu0 %v610
      %v715 = vpop.f32.mrb[0].mxu0
      %v716 = vadd.f32 0.0, %v715
      %v717 = vpop.f32.mrb[0].mxu0
      %v718 = vpop.f32.mrb[0].mxu0
      %v719 = vadd.f32 0.0, %v718
      %v720 = vpop.f32.mrb[0].mxu0
      %721 = vmatprep.mubr.bf16.mxu0 0
      %722 = vmatmul.mubr.bf16.gmra.mrb[0].mxu0 %v611
      %v723 = vpop.f32.mrb[0].mxu0
      %v724 = vadd.f32 0.0, %v723
      %v725 = vpop.f32.mrb[0].mxu0
      %v726 = vpop.f32.mrb[0].mxu0
      %v727 = vadd.f32 0.0, %v726
      %v728 = vpop.f32.mrb[0].mxu0
      %729 = vmatprep.mubr.bf16.mxu0 0
      %730 = vmatmul.mubr.bf16.gmra.mrb[0].mxu0 %v612
      %v731 = vpop.f32.mrb[0].mxu0
      %v732 = vadd.f32 0.0, %v731
      %v733 = vpop.f32.mrb[0].mxu0
      %v734 = vpop.f32.mrb[0].mxu0
      %v735 = vadd.f32 0.0, %v734
      %v736 = vpop.f32.mrb[0].mxu0
      %737 = vmatprep.mubr.bf16.mxu0 0
      %738 = vmatmul.mubr.bf16.gmra.mrb[0].mxu0 %v613
      %v739 = vpop.f32.mrb[0].mxu0
      %v740 = vadd.f32 0.0, %v739
      %v741 = vpop.f32.mrb[0].mxu0
      %v742 = vpop.f32.mrb[0].mxu0
      %v743 = vadd.f32 0.0, %v742
      %v744 = vpop.f32.mrb[0].mxu0
      %745 = vmatprep.mubr.bf16.mxu0 0
      %746 = vmatmul.mubr.bf16.gmra.mrb[0].mxu0 %v614
      %v747 = vpop.f32.mrb[0].mxu0
      %v748 = vadd.f32 0.0, %v747
      %v749 = vpop.f32.mrb[0].mxu0
      %v750 = vpop.f32.mrb[0].mxu0
      %v751 = vadd.f32 0.0, %v750
      %v752 = vpop.f32.mrb[0].mxu0
      %753 = vmatprep.mubr.bf16.mxu0 0
      %754 = vmatmul.mubr.bf16.gmra.mrb[0].mxu0 %v615
      %v755 = vpop.f32.mrb[0].mxu0
      %v756 = vadd.f32 0.0, %v755
      %v757 = vpop.f32.mrb[0].mxu0
      %v758 = vpop.f32.mrb[0].mxu0
      %v759 = vadd.f32 0.0, %v758
      %v760 = vpop.f32.mrb[0].mxu0
      %761 = vmatprep.mubr.bf16.mxu0 0
      %762 = vmatmul.mubr.bf16.gmra.mrb[0].mxu0 %v616
      %v763 = vpop.f32.mrb[0].mxu0
      %v764 = vadd.f32 0.0, %v763
      %v765 = vpop.f32.mrb[0].mxu0
      %v766 = vpop.f32.mrb[0].mxu0
      %v767 = vadd.f32 0.0, %v766
      %v768 = vpop.f32.mrb[0].mxu0
      %769 = vdwg.mxu0
      %v786 = vunpack.c.l.b16 %v439
      %v787 = vunpack.c.l.b16 %v440
      %v788 = vunpack.c.l.b16 %v441
      %v789 = vunpack.c.l.b16 %v442
      %v790 = vunpack.c.l.b16 %v443
      %v791 = vunpack.c.l.b16 %v444
      %v792 = vunpack.c.l.b16 %v445
      %v793 = vunpack.c.l.b16 %v446
      %v794 = vunpack.c.l.b16 %v447
      %v795 = vunpack.c.l.b16 %v448
      %v796 = vunpack.c.l.b16 %v449
      %v797 = vunpack.c.l.b16 %v450
      %v798 = vunpack.c.l.b16 %v451
      %v799 = vunpack.c.l.b16 %v452
      %v800 = vunpack.c.l.b16 %v453
      %v801 = vunpack.c.l.b16 %v454
      %v802 = vpack.c.b16 %v787, %v786
      %v803 = vpack.c.b16 %v789, %v788
      %v804 = vpack.c.b16 %v791, %v790
      %v805 = vpack.c.b16 %v793, %v792
      %v806 = vpack.c.b16 %v795, %v794
      %v807 = vpack.c.b16 %v797, %v796
      %v808 = vpack.c.b16 %v799, %v798
      %v809 = vpack.c.b16 %v801, %v800
      %818 = vmatprep.subr.bf16.mxu0 0
      %819 = vmatpush1.bf16.msra.mxu0 %v802
      %820 = vmatprep.subr.bf16.mxu0 0
      %821 = vmatpush1.bf16.msra.mxu0 %v803
      %822 = vmatprep.subr.bf16.mxu0 0
      %823 = vmatpush1.bf16.msra.mxu0 %v804
      %824 = vmatprep.subr.bf16.mxu0 0
      %825 = vmatpush1.bf16.msra.mxu0 %v805
      %826 = vmatprep.subr.bf16.mxu0 0
      %827 = vmatpush1.bf16.msra.mxu0 %v806
      %828 = vmatprep.subr.bf16.mxu0 0
      %829 = vmatpush1.bf16.msra.mxu0 %v807
      %830 = vmatprep.subr.bf16.mxu0 0
      %831 = vmatpush1.bf16.msra.mxu0 %v808
      %832 = vmatprep.subr.bf16.mxu0 0
      %833 = vmatpush1.bf16.msra.mxu0 %v809
      %834 = vmatprep.subr.bf16.mxu0 0
      %835 = vmatpush1.bf16.msra.mxu0 0
      %836 = vmatprep.subr.bf16.mxu0 0
      %837 = vmatpush1.bf16.msra.mxu0 0
      %838 = vmatprep.subr.bf16.mxu0 0
      %839 = vmatpush1.bf16.msra.mxu0 0
      %840 = vmatprep.subr.bf16.mxu0 0
      %841 = vmatpush1.bf16.msra.mxu0 0
      %842 = vmatprep.subr.bf16.mxu0 0
      %843 = vmatpush1.bf16.msra.mxu0 0
      %844 = vmatprep.subr.bf16.mxu0 0
      %845 = vmatpush1.bf16.msra.mxu0 0
      %846 = vmatprep.subr.bf16.mxu0 0
      %847 = vmatpush1.bf16.msra.mxu0 0
      %848 = vmatprep.subr.bf16.mxu0 0
      %849 = vmatpush1.bf16.msra.mxu0 0
      %850 = vmatprep.mubr.bf16.mxu0 0
      %851 = vmatmul.mubr.bf16.gmra.mrb[0].mxu0 %v569
      %v852 = vpop.f32.mrb[0].mxu0
      %v853 = vadd.f32 %v708, %v852
      %v854 = vpop.f32.mrb[0].mxu0
      %v855 = vpop.f32.mrb[0].mxu0
      %v856 = vadd.f32 %v711, %v855
      %v857 = vpop.f32.mrb[0].mxu0
      %858 = vmatprep.mubr.bf16.mxu0 0
      %859 = vmatmul.mubr.bf16.gmra.mrb[0].mxu0 %v570
      %v860 = vpop.f32.mrb[0].mxu0
      %v861 = vadd.f32 %v716, %v860
      %v862 = vpop.f32.mrb[0].mxu0
      %v863 = vpop.f32.mrb[0].mxu0
      %v864 = vadd.f32 %v719, %v863
      %v865 = vpop.f32.mrb[0].mxu0
      %866 = vmatprep.mubr.bf16.mxu0 0
      %867 = vmatmul.mubr.bf16.gmra.mrb[0].mxu0 %v571
      %v868 = vpop.f32.mrb[0].mxu0
      %v869 = vadd.f32 %v724, %v868
      %v870 = vpop.f32.mrb[0].mxu0
      %v871 = vpop.f32.mrb[0].mxu0
      %v872 = vadd.f32 %v727, %v871
      %v873 = vpop.f32.mrb[0].mxu0
      %874 = vmatprep.mubr.bf16.mxu0 0
      %875 = vmatmul.mubr.bf16.gmra.mrb[0].mxu0 %v572
      %v876 = vpop.f32.mrb[0].mxu0
      %v877 = vadd.f32 %v732, %v876
      %v878 = vpop.f32.mrb[0].mxu0
      %v879 = vpop.f32.mrb[0].mxu0
      %v880 = vadd.f32 %v735, %v879
      %v881 = vpop.f32.mrb[0].mxu0
      %882 = vmatprep.mubr.bf16.mxu0 0
      %883 = vmatmul.mubr.bf16.gmra.mrb[0].mxu0 %v573
      %v884 = vpop.f32.mrb[0].mxu0
      %v885 = vadd.f32 %v740, %v884
      %v886 = vpop.f32.mrb[0].mxu0
      %v887 = vpop.f32.mrb[0].mxu0
      %v888 = vadd.f32 %v743, %v887
      %v889 = vpop.f32.mrb[0].mxu0
      %890 = vmatprep.mubr.bf16.mxu0 0
      %891 = vmatmul.mubr.bf16.gmra.mrb[0].mxu0 %v574
      %v892 = vpop.f32.mrb[0].mxu0
      %v893 = vadd.f32 %v748, %v892
      %v894 = vpop.f32.mrb[0].mxu0
      %v895 = vpop.f32.mrb[0].mxu0
      %v896 = vadd.f32 %v751, %v895
      %v897 = vpop.f32.mrb[0].mxu0
      %898 = vmatprep.mubr.bf16.mxu0 0
      %899 = vmatmul.mubr.bf16.gmra.mrb[0].mxu0 %v575
      %v900 = vpop.f32.mrb[0].mxu0
      %v901 = vadd.f32 %v756, %v900
      %v902 = vpop.f32.mrb[0].mxu0
      %v903 = vpop.f32.mrb[0].mxu0
      %v904 = vadd.f32 %v759, %v903
      %v905 = vpop.f32.mrb[0].mxu0
      %906 = vmatprep.mubr.bf16.mxu0 0
      %907 = vmatmul.mubr.bf16.gmra.mrb[0].mxu0 %v576
      %v908 = vpop.f32.mrb[0].mxu0
      %v909 = vadd.f32 %v764, %v908
      %v910 = vpop.f32.mrb[0].mxu0
      %v911 = vpop.f32.mrb[0].mxu0
      %v912 = vadd.f32 %v767, %v911
      %v913 = vpop.f32.mrb[0].mxu0
      %914 = vdwg.mxu0
      %v916 = vlaneseq
      %v917 = vshrl.u32 %v916, 7
      %v918 = vsub.s32 0, %v917
      %v919 = vrot.slane %v471, %v918
      %v921 = vadd.f32 %v853, %v919
      %v922 = vadd.f32 %v856, %v919
      %v923 = vadd.f32 %v861, %v919
      %v924 = vadd.f32 %v864, %v919
      %v925 = vadd.f32 %v869, %v919
      %v926 = vadd.f32 %v872, %v919
      %v927 = vadd.f32 %v877, %v919
      %v928 = vadd.f32 %v880, %v919
      %v929 = vadd.f32 %v885, %v919
      %v930 = vadd.f32 %v888, %v919
      %v931 = vadd.f32 %v893, %v919
      %v932 = vadd.f32 %v896, %v919
      %v933 = vadd.f32 %v901, %v919
      %v934 = vadd.f32 %v904, %v919
      %v935 = vadd.f32 %v909, %v919
      %v936 = vadd.f32 %v912, %v919
      %v937 = vmul.f32 %v921, %v921
      %v938 = vmul.f32 %v922, %v922
      %v939 = vmul.f32 %v923, %v923
      %v940 = vmul.f32 %v924, %v924
      %v941 = vmul.f32 %v925, %v925
      %v942 = vmul.f32 %v926, %v926
      %v943 = vmul.f32 %v927, %v927
      %v944 = vmul.f32 %v928, %v928
      %v945 = vmul.f32 %v929, %v929
      %v946 = vmul.f32 %v930, %v930
      %v947 = vmul.f32 %v931, %v931
      %v948 = vmul.f32 %v932, %v932
      %v949 = vmul.f32 %v933, %v933
      %v950 = vmul.f32 %v934, %v934
      %v951 = vmul.f32 %v935, %v935
      %v952 = vmul.f32 %v936, %v936
      %953 = vadd.xlane.f32.xlu0 %v937
      %v954 = vpop.xlane.xlu0 %953
      %955 = vadd.xlane.f32.xlu0 %v938
      %v956 = vpop.xlane.xlu0 %955
      %957 = vadd.xlane.f32.xlu0 %v939
      %v958 = vpop.xlane.xlu0 %957
      %959 = vadd.xlane.f32.xlu0 %v940
      %v960 = vpop.xlane.xlu0 %959
      %961 = vadd.xlane.f32.xlu0 %v941
      %v962 = vpop.xlane.xlu0 %961
      %963 = vadd.xlane.f32.xlu0 %v942
      %v964 = vpop.xlane.xlu0 %963
      %965 = vadd.xlane.f32.xlu0 %v943
      %v966 = vpop.xlane.xlu0 %965
      %967 = vadd.xlane.f32.xlu0 %v944
      %v968 = vpop.xlane.xlu0 %967
      %969 = vadd.xlane.f32.xlu0 %v945
      %v970 = vpop.xlane.xlu0 %969
      %971 = vadd.xlane.f32.xlu0 %v946
      %v972 = vpop.xlane.xlu0 %971
      %973 = vadd.xlane.f32.xlu0 %v947
      %v974 = vpop.xlane.xlu0 %973
      %975 = vadd.xlane.f32.xlu0 %v948
      %v976 = vpop.xlane.xlu0 %975
      %977 = vadd.xlane.f32.xlu0 %v949
      %v978 = vpop.xlane.xlu0 %977
      %979 = vadd.xlane.f32.xlu0 %v950
      %v980 = vpop.xlane.xlu0 %979
      %981 = vadd.xlane.f32.xlu0 %v951
      %v982 = vpop.xlane.xlu0 %981
      %983 = vadd.xlane.f32.xlu0 %v952
      %v984 = vpop.xlane.xlu0 %983
      %v985 = vmax.f32 %v954, 1e-24
      %v986 = vmax.f32 %v956, 1e-24
      %v987 = vmax.f32 %v958, 1e-24
      %v988 = vmax.f32 %v960, 1e-24
      %v989 = vmax.f32 %v962, 1e-24
      %v990 = vmax.f32 %v964, 1e-24
      %v991 = vmax.f32 %v966, 1e-24
      %v992 = vmax.f32 %v968, 1e-24
      %v993 = vmax.f32 %v970, 1e-24
      %v994 = vmax.f32 %v972, 1e-24
      %v995 = vmax.f32 %v974, 1e-24
      %v996 = vmax.f32 %v976, 1e-24
      %v997 = vmax.f32 %v978, 1e-24
      %v998 = vmax.f32 %v980, 1e-24
      %v999 = vmax.f32 %v982, 1e-24
      %v1000 = vmax.f32 %v984, 1e-24
      %v1001 = vrsqrt.pop %v985
      %v1002 = vrsqrt.pop %v986
      %v1003 = vrsqrt.pop %v987
      %v1004 = vrsqrt.pop %v988
      %v1005 = vrsqrt.pop %v989
      %v1006 = vrsqrt.pop %v990
      %v1007 = vrsqrt.pop %v991
      %v1008 = vrsqrt.pop %v992
      %v1009 = vrsqrt.pop %v993
      %v1010 = vrsqrt.pop %v994
      %v1011 = vrsqrt.pop %v995
      %v1012 = vrsqrt.pop %v996
      %v1013 = vrsqrt.pop %v997
      %v1014 = vrsqrt.pop %v998
      %v1015 = vrsqrt.pop %v999
      %v1016 = vrsqrt.pop %v1000
      %v1017 = vmul.f32 %v921, %v1001
      %v1018 = vmul.f32 %v922, %v1002
      %v1019 = vmul.f32 %v923, %v1003
      %v1020 = vmul.f32 %v924, %v1004
      %v1021 = vmul.f32 %v925, %v1005
      %v1022 = vmul.f32 %v926, %v1006
      %v1023 = vmul.f32 %v927, %v1007
      %v1024 = vmul.f32 %v928, %v1008
      %v1025 = vmul.f32 %v929, %v1009
      %v1026 = vmul.f32 %v930, %v1010
      %v1027 = vmul.f32 %v931, %v1011
      %v1028 = vmul.f32 %v932, %v1012
      %v1029 = vmul.f32 %v933, %v1013
      %v1030 = vmul.f32 %v934, %v1014
      %v1031 = vmul.f32 %v935, %v1015
      %v1032 = vmul.f32 %v936, %v1016
      %vm1033 = vcmp.ge.f32.partialorder %v1017, 0.0
      %vm1034 = vcmp.ge.f32.partialorder %v1018, 0.0
      %vm1035 = vcmp.ge.f32.partialorder %v1019, 0.0
      %vm1036 = vcmp.ge.f32.partialorder %v1020, 0.0
      %vm1037 = vcmp.ge.f32.partialorder %v1021, 0.0
      %vm1038 = vcmp.ge.f32.partialorder %v1022, 0.0
      %vm1039 = vcmp.ge.f32.partialorder %v1023, 0.0
      %vm1040 = vcmp.ge.f32.partialorder %v1024, 0.0
      %vm1041 = vcmp.ge.f32.partialorder %v1025, 0.0
      %vm1042 = vcmp.ge.f32.partialorder %v1026, 0.0
      %vm1043 = vcmp.ge.f32.partialorder %v1027, 0.0
      %vm1044 = vcmp.ge.f32.partialorder %v1028, 0.0
      %vm1045 = vcmp.ge.f32.partialorder %v1029, 0.0
      %vm1046 = vcmp.ge.f32.partialorder %v1030, 0.0
      %vm1047 = vcmp.ge.f32.partialorder %v1031, 0.0
      %vm1048 = vcmp.ge.f32.partialorder %v1032, 0.0
      %v1050 = vlaneseq
      %v1051 = vshrl.u32 %v1050, 7
      %v1052 = vsub.s32 0, %v1051
      %v1053 = vrot.slane %v472, %v1052
      %v1055 = vmul.f32 %v1053, %v1017
      %v1056 = vmul.f32 %v1053, %v1018
      %v1057 = vmul.f32 %v1053, %v1019
      %v1058 = vmul.f32 %v1053, %v1020
      %v1059 = vmul.f32 %v1053, %v1021
      %v1060 = vmul.f32 %v1053, %v1022
      %v1061 = vmul.f32 %v1053, %v1023
      %v1062 = vmul.f32 %v1053, %v1024
      %v1063 = vmul.f32 %v1053, %v1025
      %v1064 = vmul.f32 %v1053, %v1026
      %v1065 = vmul.f32 %v1053, %v1027
      %v1066 = vmul.f32 %v1053, %v1028
      %v1067 = vmul.f32 %v1053, %v1029
      %v1068 = vmul.f32 %v1053, %v1030
      %v1069 = vmul.f32 %v1053, %v1031
      %v1070 = vmul.f32 %v1053, %v1032
      %v1071 = vsel %vm1033, %v1017, %v1055
      %v1072 = vsel %vm1034, %v1018, %v1056
      %v1073 = vsel %vm1035, %v1019, %v1057
      %v1074 = vsel %vm1036, %v1020, %v1058
      %v1075 = vsel %vm1037, %v1021, %v1059
      %v1076 = vsel %vm1038, %v1022, %v1060
      %v1077 = vsel %vm1039, %v1023, %v1061
      %v1078 = vsel %vm1040, %v1024, %v1062
      %v1079 = vsel %vm1041, %v1025, %v1063
      %v1080 = vsel %vm1042, %v1026, %v1064
      %v1081 = vsel %vm1043, %v1027, %v1065
      %v1082 = vsel %vm1044, %v1028, %v1066
      %v1083 = vsel %vm1045, %v1029, %v1067
      %v1084 = vsel %vm1046, %v1030, %v1068
      %v1085 = vsel %vm1047, %v1031, %v1069
      %v1086 = vsel %vm1048, %v1032, %v1070
      %v1087 = vpack.c.bf16 %v1072, %v1071
      %v1088 = vpack.c.bf16 %v1074, %v1073
      %v1089 = vpack.c.bf16 %v1076, %v1075
      %v1090 = vpack.c.bf16 %v1078, %v1077
      %v1091 = vpack.c.bf16 %v1080, %v1079
      %v1092 = vpack.c.bf16 %v1082, %v1081
      %v1093 = vpack.c.bf16 %v1084, %v1083
      %v1094 = vpack.c.bf16 %v1086, %v1085
      %v1103 = vunpack.c.l.b16 %v1087
      %v1104 = vunpack.c.h.b16 %v1087
      %v1105 = vunpack.c.l.b16 %v1088
      %v1106 = vunpack.c.h.b16 %v1088
      %v1107 = vunpack.c.l.b16 %v1089
      %v1108 = vunpack.c.h.b16 %v1089
      %v1109 = vunpack.c.l.b16 %v1090
      %v1110 = vunpack.c.h.b16 %v1090
      %v1111 = vunpack.c.l.b16 %v1091
      %v1112 = vunpack.c.h.b16 %v1091
      %v1113 = vunpack.c.l.b16 %v1092
      %v1114 = vunpack.c.h.b16 %v1092
      %v1115 = vunpack.c.l.b16 %v1093
      %v1116 = vunpack.c.h.b16 %v1093
      %v1117 = vunpack.c.l.b16 %v1094
      %v1118 = vunpack.c.h.b16 %v1094
      %v1119 = vpack.c.b16 %v1103, %v1103
      %v1120 = vpack.c.b16 %v1104, %v1104
      %v1121 = vpack.c.b16 %v1105, %v1105
      %v1122 = vpack.c.b16 %v1106, %v1106
      %v1123 = vpack.c.b16 %v1107, %v1107
      %v1124 = vpack.c.b16 %v1108, %v1108
      %v1125 = vpack.c.b16 %v1109, %v1109
      %v1126 = vpack.c.b16 %v1110, %v1110
      %v1127 = vpack.c.b16 %v1111, %v1111
      %v1128 = vpack.c.b16 %v1112, %v1112
      %v1129 = vpack.c.b16 %v1113, %v1113
      %v1130 = vpack.c.b16 %v1114, %v1114
      %v1131 = vpack.c.b16 %v1115, %v1115
      %v1132 = vpack.c.b16 %v1116, %v1116
      %v1133 = vpack.c.b16 %v1117, %v1117
      %v1134 = vpack.c.b16 %v1118, %v1118
      %1151 = vst [vmem:[#allocation11] sm:$0xf] %v1119
      %1152 = vst [vmem:[#allocation11 + $0x4] sm:$0xf] %v1120
      %1153 = vst [vmem:[#allocation11 + $0x8] sm:$0xf] %v1121
      %1154 = vst [vmem:[#allocation11 + $0xc] sm:$0xf] %v1122
      %1155 = vst [vmem:[#allocation11 + $0x10] sm:$0xf] %v1123
      %1156 = vst [vmem:[#allocation11 + $0x14] sm:$0xf] %v1124
      %1157 = vst [vmem:[#allocation11 + $0x18] sm:$0xf] %v1125
      %1158 = vst [vmem:[#allocation11 + $0x1c] sm:$0xf] %v1126
      %1159 = vst [vmem:[#allocation11 + $0x20] sm:$0xf] %v1127
      %1160 = vst [vmem:[#allocation11 + $0x24] sm:$0xf] %v1128
      %1161 = vst [vmem:[#allocation11 + $0x28] sm:$0xf] %v1129
      %1162 = vst [vmem:[#allocation11 + $0x2c] sm:$0xf] %v1130
      %1163 = vst [vmem:[#allocation11 + $0x30] sm:$0xf] %v1131
      %1164 = vst [vmem:[#allocation11 + $0x34] sm:$0xf] %v1132
      %1165 = vst [vmem:[#allocation11 + $0x38] sm:$0xf] %v1133
      %1166 = vst [vmem:[#allocation11 + $0x3c] sm:$0xf] %v1134
      %v1167 = vld [vmem:[#allocation9] sm:$0xf]
      %v1168 = vld [vmem:[#allocation9 + $0x4] sm:$0xf]
      %v1169 = vld [vmem:[#allocation9 + $0x8] sm:$0xf]
      %v1170 = vld [vmem:[#allocation9 + $0xc] sm:$0xf]
      %v1171 = vld [vmem:[#allocation9 + $0x10] sm:$0xf]
      %v1172 = vld [vmem:[#allocation9 + $0x14] sm:$0xf]
      %v1173 = vld [vmem:[#allocation9 + $0x18] sm:$0xf]
      %v1174 = vld [vmem:[#allocation9 + $0x1c] sm:$0xf]
      %v1175 = vld [vmem:[#allocation9 + $0x20] sm:$0xf]
      %v1176 = vld [vmem:[#allocation9 + $0x24] sm:$0xf]
      %v1177 = vld [vmem:[#allocation9 + $0x28] sm:$0xf]
      %v1178 = vld [vmem:[#allocation9 + $0x2c] sm:$0xf]
      %v1179 = vld [vmem:[#allocation9 + $0x30] sm:$0xf]
      %v1180 = vld [vmem:[#allocation9 + $0x34] sm:$0xf]
      %v1181 = vld [vmem:[#allocation9 + $0x38] sm:$0xf]
      %v1182 = vld [vmem:[#allocation9 + $0x3c] sm:$0xf]
      %v1183 = vld [vmem:[%s8] sm:$0x1]
      %v1185 = vlaneseq
      %v1186 = vshrl.u32 %v1185, 7
      %v1187 = vsub.s32 0, %v1186
      %v1188 = vrot.slane %v1183, %v1187
      %v1206 = vunpack.c.l.b16 %v1167
      %v1207 = vunpack.c.l.b16 %v1168
      %v1208 = vunpack.c.l.b16 %v1169
      %v1209 = vunpack.c.l.b16 %v1170
      %v1210 = vunpack.c.l.b16 %v1171
      %v1211 = vunpack.c.l.b16 %v1172
      %v1212 = vunpack.c.l.b16 %v1173
      %v1213 = vunpack.c.l.b16 %v1174
      %v1214 = vunpack.c.l.b16 %v1175
      %v1215 = vunpack.c.l.b16 %v1176
      %v1216 = vunpack.c.l.b16 %v1177
      %v1217 = vunpack.c.l.b16 %v1178
      %v1218 = vunpack.c.l.b16 %v1179
      %v1219 = vunpack.c.l.b16 %v1180
      %v1220 = vunpack.c.l.b16 %v1181
      %v1221 = vunpack.c.l.b16 %v1182
      %v1222 = vpack.c.b16 %v1207, %v1206
      %v1223 = vpack.c.b16 %v1209, %v1208
      %v1224 = vpack.c.b16 %v1211, %v1210
      %v1225 = vpack.c.b16 %v1213, %v1212
      %v1226 = vpack.c.b16 %v1215, %v1214
      %v1227 = vpack.c.b16 %v1217, %v1216
      %v1228 = vpack.c.b16 %v1219, %v1218
      %v1229 = vpack.c.b16 %v1221, %v1220
      %1238 = vmatprep.subr.bf16.mxu0 0
      %1239 = vmatpush1.bf16.msra.mxu0 %v1222
      %1240 = vmatprep.subr.bf16.mxu0 0
      %1241 = vmatpush1.bf16.msra.mxu0 %v1223
      %1242 = vmatprep.subr.bf16.mxu0 0
      %1243 = vmatpush1.bf16.msra.mxu0 %v1224
      %1244 = vmatprep.subr.bf16.mxu0 0
      %1245 = vmatpush1.bf16.msra.mxu0 %v1225
      %1246 = vmatprep.subr.bf16.mxu0 0
      %1247 = vmatpush1.bf16.msra.mxu0 %v1226
      %1248 = vmatprep.subr.bf16.mxu0 0
      %1249 = vmatpush1.bf16.msra.mxu0 %v1227
      %1250 = vmatprep.subr.bf16.mxu0 0
      %1251 = vmatpush1.bf16.msra.mxu0 %v1228
      %1252 = vmatprep.subr.bf16.mxu0 0
      %1253 = vmatpush1.bf16.msra.mxu0 %v1229
      %1254 = vmatprep.subr.bf16.mxu0 0
      %1255 = vmatpush1.bf16.msra.mxu0 0
      %1256 = vmatprep.subr.bf16.mxu0 0
      %1257 = vmatpush1.bf16.msra.mxu0 0
      %1258 = vmatprep.subr.bf16.mxu0 0
      %1259 = vmatpush1.bf16.msra.mxu0 0
      %1260 = vmatprep.subr.bf16.mxu0 0
      %1261 = vmatpush1.bf16.msra.mxu0 0
      %1262 = vmatprep.subr.bf16.mxu0 0
      %1263 = vmatpush1.bf16.msra.mxu0 0
      %1264 = vmatprep.subr.bf16.mxu0 0
      %1265 = vmatpush1.bf16.msra.mxu0 0
      %1266 = vmatprep.subr.bf16.mxu0 0
      %1267 = vmatpush1.bf16.msra.mxu0 0
      %1268 = vmatprep.subr.bf16.mxu0 0
      %1269 = vmatpush1.bf16.msra.mxu0 0
      %1270 = vmatprep.mubr.bf16.mxu0 0
      %1271 = vmatmul.mubr.bf16.gmra.mrb[0].mxu0 %v609
      %v1272 = vpop.f32.mrb[0].mxu0
      %v1273 = vadd.f32 %v1188, %v1272
      %v1274 = vpop.f32.mrb[0].mxu0
      %v1275 = vpop.f32.mrb[0].mxu0
      %v1276 = vadd.f32 %v1188, %v1275
      %v1277 = vpop.f32.mrb[0].mxu0
      %1278 = vmatprep.mubr.bf16.mxu0 0
      %1279 = vmatmul.mubr.bf16.gmra.mrb[0].mxu0 %v610
      %v1280 = vpop.f32.mrb[0].mxu0
      %v1281 = vadd.f32 %v1188, %v1280
      %v1282 = vpop.f32.mrb[0].mxu0
      %v1283 = vpop.f32.mrb[0].mxu0
      %v1284 = vadd.f32 %v1188, %v1283
      %v1285 = vpop.f32.mrb[0].mxu0
      %1286 = vmatprep.mubr.bf16.mxu0 0
      %1287 = vmatmul.mubr.bf16.gmra.mrb[0].mxu0 %v611
      %v1288 = vpop.f32.mrb[0].mxu0
      %v1289 = vadd.f32 %v1188, %v1288
      %v1290 = vpop.f32.mrb[0].mxu0
      %v1291 = vpop.f32.mrb[0].mxu0
      %v1292 = vadd.f32 %v1188, %v1291
      %v1293 = vpop.f32.mrb[0].mxu0
      %1294 = vmatprep.mubr.bf16.mxu0 0
      %1295 = vmatmul.mubr.bf16.gmra.mrb[0].mxu0 %v612
      %v1296 = vpop.f32.mrb[0].mxu0
      %v1297 = vadd.f32 %v1188, %v1296
      %v1298 = vpop.f32.mrb[0].mxu0
      %v1299 = vpop.f32.mrb[0].mxu0
      %v1300 = vadd.f32 %v1188, %v1299
      %v1301 = vpop.f32.mrb[0].mxu0
      %1302 = vmatprep.mubr.bf16.mxu0 0
      %1303 = vmatmul.mubr.bf16.gmra.mrb[0].mxu0 %v613
      %v1304 = vpop.f32.mrb[0].mxu0
      %v1305 = vadd.f32 %v1188, %v1304
      %v1306 = vpop.f32.mrb[0].mxu0
      %v1307 = vpop.f32.mrb[0].mxu0
      %v1308 = vadd.f32 %v1188, %v1307
      %v1309 = vpop.f32.mrb[0].mxu0
      %1310 = vmatprep.mubr.bf16.mxu0 0
      %1311 = vmatmul.mubr.bf16.gmra.mrb[0].mxu0 %v614
      %v1312 = vpop.f32.mrb[0].mxu0
      %v1313 = vadd.f32 %v1188, %v1312
      %v1314 = vpop.f32.mrb[0].mxu0
      %v1315 = vpop.f32.mrb[0].mxu0
      %v1316 = vadd.f32 %v1188, %v1315
      %v1317 = vpop.f32.mrb[0].mxu0
      %1318 = vmatprep.mubr.bf16.mxu0 0
      %1319 = vmatmul.mubr.bf16.gmra.mrb[0].mxu0 %v615
      %v1320 = vpop.f32.mrb[0].mxu0
      %v1321 = vadd.f32 %v1188, %v1320
      %v1322 = vpop.f32.mrb[0].mxu0
      %v1323 = vpop.f32.mrb[0].mxu0
      %v1324 = vadd.f32 %v1188, %v1323
      %v1325 = vpop.f32.mrb[0].mxu0
      %1326 = vmatprep.mubr.bf16.mxu0 0
      %1327 = vmatmul.mubr.bf16.gmra.mrb[0].mxu0 %v616
      %v1328 = vpop.f32.mrb[0].mxu0
      %v1329 = vadd.f32 %v1188, %v1328
      %v1330 = vpop.f32.mrb[0].mxu0
      %v1331 = vpop.f32.mrb[0].mxu0
      %v1332 = vadd.f32 %v1188, %v1331
      %v1333 = vpop.f32.mrb[0].mxu0
      %1334 = vdwg.mxu0
      %v1335 = vpack.c.bf16 %v1276, %v1273
      %v1336 = vpack.c.bf16 %v1284, %v1281
      %v1337 = vpack.c.bf16 %v1292, %v1289
      %v1338 = vpack.c.bf16 %v1300, %v1297
      %v1339 = vpack.c.bf16 %v1308, %v1305
      %v1340 = vpack.c.bf16 %v1316, %v1313
      %v1341 = vpack.c.bf16 %v1324, %v1321
      %v1342 = vpack.c.bf16 %v1332, %v1329
      %v1351 = vunpack.c.l.b16 %v1335
      %v1352 = vunpack.c.h.b16 %v1335
      %v1353 = vunpack.c.l.b16 %v1336
      %v1354 = vunpack.c.h.b16 %v1336
      %v1355 = vunpack.c.l.b16 %v1337
      %v1356 = vunpack.c.h.b16 %v1337
      %v1357 = vunpack.c.l.b16 %v1338
      %v1358 = vunpack.c.h.b16 %v1338
      %v1359 = vunpack.c.l.b16 %v1339
      %v1360 = vunpack.c.h.b16 %v1339
      %v1361 = vunpack.c.l.b16 %v1340
      %v1362 = vunpack.c.h.b16 %v1340
      %v1363 = vunpack.c.l.b16 %v1341
      %v1364 = vunpack.c.h.b16 %v1341
      %v1365 = vunpack.c.l.b16 %v1342
      %v1366 = vunpack.c.h.b16 %v1342
      %v1367 = vpack.c.b16 %v1351, %v1351
      %v1368 = vpack.c.b16 %v1352, %v1352
      %v1369 = vpack.c.b16 %v1353, %v1353
      %v1370 = vpack.c.b16 %v1354, %v1354
      %v1371 = vpack.c.b16 %v1355, %v1355
      %v1372 = vpack.c.b16 %v1356, %v1356
      %v1373 = vpack.c.b16 %v1357, %v1357
      %v1374 = vpack.c.b16 %v1358, %v1358
      %v1375 = vpack.c.b16 %v1359, %v1359
      %v1376 = vpack.c.b16 %v1360, %v1360
      %v1377 = vpack.c.b16 %v1361, %v1361
      %v1378 = vpack.c.b16 %v1362, %v1362
      %v1379 = vpack.c.b16 %v1363, %v1363
      %v1380 = vpack.c.b16 %v1364, %v1364
      %v1381 = vpack.c.b16 %v1365, %v1365
      %v1382 = vpack.c.b16 %v1366, %v1366
      %1399 = vst [vmem:[#allocation12] sm:$0xf] %v1367
      %1400 = vst [vmem:[#allocation12 + $0x4] sm:$0xf] %v1368
      %1401 = vst [vmem:[#allocation12 + $0x8] sm:$0xf] %v1369
      %1402 = vst [vmem:[#allocation12 + $0xc] sm:$0xf] %v1370
      %1403 = vst [vmem:[#allocation12 + $0x10] sm:$0xf] %v1371
      %1404 = vst [vmem:[#allocation12 + $0x14] sm:$0xf] %v1372
      %1405 = vst [vmem:[#allocation12 + $0x18] sm:$0xf] %v1373
      %1406 = vst [vmem:[#allocation12 + $0x1c] sm:$0xf] %v1374
      %1407 = vst [vmem:[#allocation12 + $0x20] sm:$0xf] %v1375
      %1408 = vst [vmem:[#allocation12 + $0x24] sm:$0xf] %v1376
      %1409 = vst [vmem:[#allocation12 + $0x28] sm:$0xf] %v1377
      %1410 = vst [vmem:[#allocation12 + $0x2c] sm:$0xf] %v1378
      %1411 = vst [vmem:[#allocation12 + $0x30] sm:$0xf] %v1379
      %1412 = vst [vmem:[#allocation12 + $0x34] sm:$0xf] %v1380
      %1413 = vst [vmem:[#allocation12 + $0x38] sm:$0xf] %v1381
      %1414 = vst [vmem:[#allocation12 + $0x3c] sm:$0xf] %v1382
    $region65: #{tpu_custom_call.1} parent=1 // pred_fallthru
      _
    // Predicated region
    $region66: #{tpu_custom_call.1} parent=1 // pred_check
      _
    $region67: #{tpu_custom_call.1} parent=1 // pred_check_branch
      %1416 = sbr.rel (0) target = $region69
    $region68: #{tpu_custom_call.1} parent=1 // pred_region
      %s1418 = ssub.s32 1024, 1024
      %1419 = vsyncadd [#allocation5], %s1418
      %s1420 = sshll.u32 [#allocation11], 4
      %s1421 = int_to_ptr.vmem [resolvable:$true] %s1420
      %1426 = dma.vmem_to_hbm [thread:$0]  %s1421, 1024, %s10, [#allocation5], 64, 64, 4
    $region69: #{tpu_custom_call.1} parent=1 // pred_fallthru
      _
    // Predicated region
    $region70: #{tpu_custom_call.1} parent=1 // pred_check
      _
    $region71: #{tpu_custom_call.1} parent=1 // pred_check_branch
      %1428 = sbr.rel (0) target = $region73
    $region72: #{tpu_custom_call.1} parent=1 // pred_region
      %s1430 = ssub.s32 1024, 1024
      %1431 = vsyncadd [#allocation13], %s1430
      %s1432 = sshll.u32 [#allocation12], 4
      %s1433 = int_to_ptr.vmem [resolvable:$true] %s1432
      %1438 = dma.vmem_to_hbm [thread:$0]  %s1433, 1024, %s11, [#allocation13], 64, 64, 4
    $region73: #{tpu_custom_call.1} parent=1 // pred_fallthru
      _
    // Predicated region
    $region74: #{tpu_custom_call.1} parent=1 // pred_check
      _
    $region75: #{tpu_custom_call.1} parent=1 // pred_check_branch
      %1440 = sbr.rel (0) target = $region77
    $region76: #{tpu_custom_call.1} parent=1 // pred_region
      %1441 = dma.done [#allocation5], 1024
    $region77: #{tpu_custom_call.1} parent=1 // pred_fallthru
      _
    // Predicated region
    $region78: #{tpu_custom_call.1} parent=1 // pred_check
      _
    $region79: #{tpu_custom_call.1} parent=1 // pred_check_branch
      %1443 = sbr.rel (0) target = $region81
    $region80: #{tpu_custom_call.1} parent=1 // pred_region
      %1444 = dma.done [#allocation13], 1024
    $region81: #{tpu_custom_call.1} parent=1 // pred_fallthru
      _
    %1445 = vsyncpa [#allocation4], 1
    %1446 = vsyncpa [#allocation7], 1
    %1447 = vsyncpa [#allocation10], 1
    %1448 = vsyncpa [#allocation5], 1
    %1449 = vsyncpa [#allocation13], 1

</llo_original>
